<compile_context>
chip_gen: v5e
topology: v5e:2x2
jax: 0.10.0
libtpu: 0.0.40
codegen_flags: <defaults>
</compile_context>

<pallas_src>
import math
import functools

import jax
import jax.numpy as jnp
from jax.experimental import pallas as pl
from jax.experimental.pallas import tpu as pltpu


_VMEM_LIMIT_BYTES = 48 * 1024 * 1024   # explicit scoped-VMEM budget (< v7x 64 MiB)


def _cparams(semantics):
    return pltpu.CompilerParams(dimension_semantics=semantics,
                                vmem_limit_bytes=_VMEM_LIMIT_BYTES)


# ---------------------------------------------------------------------------
# Pallas kernels (channels-last rows; channel axis on lanes)
# ---------------------------------------------------------------------------

def _bn_relu_pad_kernel(x_ref, g_ref, b_ref, o_ref, *, n, l, pad, eps):
    """BatchNorm1d (batch stats, single pass) + ReLU; emits a zero-padded slab.

    x_ref: (n*l, ct)   o_ref: (n*(l+2*pad), ct), with `pad` zero rows per batch
    on each side (the zero pad is shared by conv1 and -- because the data is
    post-ReLU -- by the shortcut max-pool).
    """
    x = x_ref[...].astype(jnp.float32)
    cnt = float(n * l)
    mu = jnp.sum(x, axis=0, keepdims=True) / cnt
    var = jnp.sum(x * x, axis=0, keepdims=True) / cnt - mu * mu
    scale = jax.lax.rsqrt(var + eps) * g_ref[...]
    shift = b_ref[...] - mu * scale
    y = jnp.maximum(x * scale + shift, 0.0).astype(o_ref.dtype)
    lp = l + 2 * pad
    zrow = jnp.zeros((pad, x.shape[1]), o_ref.dtype)
    for i in range(n):                                   # n is small & static
        o_ref[i * lp:i * lp + pad, :] = zrow
        o_ref[i * lp + pad:i * lp + pad + l, :] = y[i * l:(i + 1) * l, :]
        o_ref[i * lp + pad + l:(i + 1) * lp, :] = zrow


def _conv1_bn_relu_kernel(h_ref, w_ref, g_ref, b_ref, o_ref, *,
                          n, l1, lp, d1, d2, eps):
    """conv1 (stride 1, dilation d1; taps sliced in-kernel) + bn2 + ReLU.

    h_ref: (n*lp, cin) d1-padded bn1+ReLU slab (bf16).
    o_ref: (n*(l1+2*d2), cot) d2-padded output slab (bf16) for conv2.
    """
    outs, s1, s2 = [], None, None
    for i in range(n):
        acc = None
        for k in range(3):
            r0 = i * lp + k * d1
            tap = h_ref[r0:r0 + l1, :]
            c = jnp.dot(tap, w_ref[k], preferred_element_type=jnp.float32)
            acc = c if acc is None else acc + c
        outs.append(acc)
        ps1 = jnp.sum(acc, axis=0, keepdims=True)
        ps2 = jnp.sum(acc * acc, axis=0, keepdims=True)
        s1 = ps1 if s1 is None else s1 + ps1
        s2 = ps2 if s2 is None else s2 + ps2
    cnt = float(n * l1)
    mu = s1 / cnt
    var = s2 / cnt - mu * mu
    scale = jax.lax.rsqrt(var + eps) * g_ref[...]
    shift = b_ref[...] - mu * scale
    l1p = l1 + 2 * d2
    zrow = jnp.zeros((d2, o_ref.shape[1]), o_ref.dtype)
    for i in range(n):
        y = jnp.maximum(outs[i] * scale + shift, 0.0).astype(o_ref.dtype)
        o_ref[i * l1p:i * l1p + d2, :] = zrow
        o_ref[i * l1p + d2:i * l1p + d2 + l1, :] = y
        o_ref[i * l1p + d2 + l1:(i + 1) * l1p, :] = zrow


def _conv1_bn_relu_sc_kernel(hev_ref, hod_ref, w_ref, g_ref, b_ref,
                             scw_ref, scg_ref, scb_ref, o_ref, sc_ref, *,
                             n, l1, le, lo, d1, d2, eps):
    """conv1 (stride 2) + bn2 + ReLU  AND  shortcut (maxpool k3/s2/p1 -> 1x1 conv -> BN).

    hev_ref/hod_ref: even/odd length-parity halves of the d1-padded bn1+ReLU slab,
    shapes (n*le, cin) / (n*lo, cin).  A stride-2 tap starting at padded position p
    is a *contiguous* slice of the parity-(p%2) half starting at p//2.
    """
    def tap(i, p):
        if p % 2 == 0:
            base = i * le + p // 2
            return hev_ref[base:base + l1, :]
        base = i * lo + p // 2
        return hod_ref[base:base + l1, :]

    conv_outs, sc_outs = [], []
    s1 = s2 = t1 = t2 = None
    for i in range(n):
        # conv1: taps at padded positions k*d1, stride 2
        acc = None
        for k in range(3):
            c = jnp.dot(tap(i, k * d1), w_ref[k], preferred_element_type=jnp.float32)
            acc = c if acc is None else acc + c
        conv_outs.append(acc)
        ps1 = jnp.sum(acc, axis=0, keepdims=True)
        ps2 = jnp.sum(acc * acc, axis=0, keepdims=True)
        s1 = ps1 if s1 is None else s1 + ps1
        s2 = ps2 if s2 is None else s2 + ps2
        # shortcut max-pool: windows at padded positions d1-1+q (q=0..2), stride 2;
        # the zero pad is a valid pad value because the input is post-ReLU (>= 0).
        mx = tap(i, d1 - 1)
        mx = jnp.maximum(mx, tap(i, d1))
        mx = jnp.maximum(mx, tap(i, d1 + 1))
        proj = jnp.dot(mx, scw_ref[...], preferred_element_type=jnp.float32)
        sc_outs.append(proj)
        pt1 = jnp.sum(proj, axis=0, keepdims=True)
        pt2 = jnp.sum(proj * proj, axis=0, keepdims=True)
        t1 = pt1 if t1 is None else t1 + pt1
        t2 = pt2 if t2 is None else t2 + pt2

    cnt = float(n * l1)
    mu = s1 / cnt
    var = s2 / cnt - mu * mu
    scale = jax.lax.rsqrt(var + eps) * g_ref[...]
    shift = b_ref[...] - mu * scale
    smu = t1 / cnt
    svar = t2 / cnt - smu * smu
    sscale = jax.lax.rsqrt(svar + eps) * scg_ref[...]
    sshift = scb_ref[...] - smu * sscale

    l1p = l1 + 2 * d2
    zrow = jnp.zeros((d2, o_ref.shape[1]), o_ref.dtype)
    for i in range(n):
        y = jnp.maximum(conv_outs[i] * scale + shift, 0.0).astype(o_ref.dtype)
        o_ref[i * l1p:i * l1p + d2, :] = zrow
        o_ref[i * l1p + d2:i * l1p + d2 + l1, :] = y
        o_ref[i * l1p + d2 + l1:(i + 1) * l1p, :] = zrow
        sc_ref[i * l1:(i + 1) * l1, :] = (sc_outs[i] * sscale + sshift).astype(sc_ref.dtype)


def _conv2_se_add_kernel(h_ref, w_ref, f1w_ref, f1b_ref, f2w_ref, f2b_ref,
                         sc_ref, o_ref, *, l1, d2):
    """conv2 (stride 1, dilation d2) + squeeze-excite + residual add.

    One batch element per grid step (leading batch dim squeezed by the BlockSpec),
    so the SE is fully vectorized: one row-reduction, two tiny matmuls, one
    broadcast multiply.
    """
    acc = None
    for k in range(3):
        tap = h_ref[k * d2:k * d2 + l1, :]
        c = jnp.dot(tap, w_ref[k], preferred_element_type=jnp.float32)
        acc = c if acc is None else acc + c
    w = jnp.sum(acc, axis=0, keepdims=True) * (1.0 / float(l1))     # avg-pool (1, cp)
    s = jnp.maximum(
        jnp.dot(w, f1w_ref[...], preferred_element_type=jnp.float32) + f1b_ref[...],
        0.0)
    z = jnp.dot(s, f2w_ref[...], preferred_element_type=jnp.float32) + f2b_ref[...]
    gate = 1.0 / (1.0 + jnp.exp(-z))                                # sigmoid
    out = acc * gate + sc_ref[...].astype(jnp.float32)
    o_ref[...] = out.astype(o_ref.dtype)


# ---------------------------------------------------------------------------
# Parameter init (deterministic; weights pre-transposed, lane-padded, bf16)
# ---------------------------------------------------------------------------

def _round_up(v, m):
    return (v + m - 1) // m * m


def _uniform(key, shape, fan_in):
    bound = 1.0 / math.sqrt(fan_in)
    return jax.random.uniform(key, shape, jnp.float32, -bound, bound)


def init_preact_block(key, in_planes, planes, *, stride=1, dilations=(1, 2)):
    sq = max(planes // 16, 1)
    cp = _round_up(planes, 128)            # lane-dense channel padding (stores + MXU N)
    ks = jax.random.split(key, 7)
    w1 = _uniform(ks[0], (planes, in_planes, 3), in_planes * 3)   # torch (Cout, Cin, K)
    w2 = _uniform(ks[1], (planes, planes, 3), planes * 3)
    fc1_w = _uniform(ks[2], (sq, planes, 1), planes)
    fc1_b = _uniform(ks[3], (sq,), planes)
    fc2_w = _uniform(ks[4], (planes, sq, 1), sq)
    fc2_b = _uniform(ks[5], (planes,), sq)
    has_sc = (stride != 1) or (in_planes != planes)

    def pad_to_cp(a, axis):
        widths = [(0, 0)] * a.ndim
        widths[axis] = (0, cp - planes)
        return jnp.pad(a, widths)

    w1_t = pad_to_cp(jnp.transpose(w1, (2, 1, 0)), 2)             # (3, Cin, cp)
    w2_t = pad_to_cp(pad_to_cp(jnp.transpose(w2, (2, 1, 0)), 2), 1)  # (3, cp, cp)

    params = dict(
        bn1_g=jnp.ones((1, in_planes), jnp.float32),
        bn1_b=jnp.zeros((1, in_planes), jnp.float32),
        bn2_g=jnp.ones((1, cp), jnp.float32),
        bn2_b=jnp.zeros((1, cp), jnp.float32),
        w1=w1_t.astype(jnp.bfloat16),
        w2=w2_t.astype(jnp.bfloat16),
        fc1_w=pad_to_cp(jnp.transpose(fc1_w[:, :, 0], (1, 0)), 0),   # (cp, sq)
        fc1_b=fc1_b.reshape(1, sq),
        fc2_w=pad_to_cp(jnp.transpose(fc2_w[:, :, 0], (1, 0)), 1),   # (sq, cp)
        fc2_b=pad_to_cp(fc2_b.reshape(1, planes), 1),                # (1, cp)
    )
    if has_sc:
        sc_w = _uniform(ks[6], (planes, in_planes, 1), in_planes)
        params.update(
            sc_w=pad_to_cp(jnp.transpose(sc_w[:, :, 0], (1, 0)), 1).astype(jnp.bfloat16),
            sc_g=jnp.ones((1, cp), jnp.float32),
            sc_b=jnp.zeros((1, cp), jnp.float32),
        )
    cfg = dict(stride=stride, d1=dilations[0], d2=dilations[1], has_sc=has_sc,
               eps=1e-5, planes=planes, cp=cp, sq=sq)
    return params, cfg


# ---------------------------------------------------------------------------
# Forward pass: 3 pallas_calls, channels-last end-to-end
# ---------------------------------------------------------------------------

def preact_block_forward(params, cfg, x):
    N, Cin, L = x.shape
    s, d1, d2 = cfg["stride"], cfg["d1"], cfg["d2"]
    has_sc, eps = cfg["has_sc"], cfg["eps"]
    planes, cp, sq = cfg["planes"], cfg["cp"], cfg["sq"]
    assert d1 >= 1 and d2 >= 1

    L1 = (L - 1) // s + 1                 # conv1 / block output length (pad = dilation)
    Lp = L + 2 * d1                       # bn1 slab padded for conv1 (and max-pool)
    L1p = L1 + 2 * d2                     # conv1 slab padded for conv2

    # boundary: NCL -> channels-last rows (the only relayout on the way in)
    x_cl = jnp.transpose(x, (0, 2, 1)).reshape(N * L, Cin)

    # --- (1) bn1 + ReLU, emitted directly as the d1-zero-padded slab (bf16) ---
    ct1 = 128 if Cin % 128 == 0 else Cin
    h1p = pl.pallas_call(
        functools.partial(_bn_relu_pad_kernel, n=N, l=L, pad=d1, eps=eps),
        grid=(Cin // ct1,),
        in_specs=[pl.BlockSpec((N * L, ct1), lambda c: (0, c)),
                  pl.BlockSpec((1, ct1), lambda c: (0, c)),
                  pl.BlockSpec((1, ct1), lambda c: (0, c))],
        out_specs=pl.BlockSpec((N * Lp, ct1), lambda c: (0, c)),
        out_shape=jax.ShapeDtypeStruct((N * Lp, Cin), jnp.bfloat16),
        compiler_params=_cparams(("parallel",)),
    )(x_cl, params["bn1_g"], params["bn1_b"])

    ct2 = 128 if cp % 128 == 0 else cp    # cp is a multiple of 128 -> ct2 == 128
    if has_sc:
        if s != 2:
            raise NotImplementedError(
                "projection shortcut requires stride 2 (as in the PyTorch module)")
        # even/odd length-parity halves: stride-2 taps (conv1 and max-pool) become
        # contiguous in-kernel slices; total data equals the slab (no duplication).
        le, lo = (Lp + 1) // 2, Lp // 2
        h3 = h1p.reshape(N, Lp, Cin)
        h_ev = h3[:, 0::2, :].reshape(N * le, Cin)
        h_od = h3[:, 1::2, :].reshape(N * lo, Cin)
        h2p, sc2 = pl.pallas_call(
            functools.partial(_conv1_bn_relu_sc_kernel, n=N, l1=L1, le=le, lo=lo,
                              d1=d1, d2=d2, eps=eps),
            grid=(cp // ct2,),
            in_specs=[pl.BlockSpec((N * le, Cin), lambda c: (0, 0)),
                      pl.BlockSpec((N * lo, Cin), lambda c: (0, 0)),
                      pl.BlockSpec((3, Cin, ct2), lambda c: (0, 0, c)),
                      pl.BlockSpec((1, ct2), lambda c: (0, c)),
                      pl.BlockSpec((1, ct2), lambda c: (0, c)),
                      pl.BlockSpec((Cin, ct2), lambda c: (0, c)),
                      pl.BlockSpec((1, ct2), lambda c: (0, c)),
                      pl.BlockSpec((1, ct2), lambda c: (0, c))],
            out_specs=[pl.BlockSpec((N * L1p, ct2), lambda c: (0, c)),
                       pl.BlockSpec((N * L1, ct2), lambda c: (0, c))],
            out_shape=(jax.ShapeDtypeStruct((N * L1p, cp), jnp.bfloat16),
                       jax.ShapeDtypeStruct((N * L1, cp), jnp.bfloat16)),
            compiler_params=_cparams(("parallel",)),
        )(h_ev, h_od, params["w1"], params["bn2_g"], params["bn2_b"],
          params["sc_w"], params["sc_g"], params["sc_b"])
        sc3 = sc2.reshape(N, L1, cp)
    else:
        assert s == 1
        h2p = pl.pallas_call(
            functools.partial(_conv1_bn_relu_kernel, n=N, l1=L1, lp=Lp,
                              d1=d1, d2=d2, eps=eps),
            grid=(cp // ct2,),
            in_specs=[pl.BlockSpec((N * Lp, Cin), lambda c: (0, 0)),
                      pl.BlockSpec((3, Cin, ct2), lambda c: (0, 0, c)),
                      pl.BlockSpec((1, ct2), lambda c: (0, c)),
                      pl.BlockSpec((1, ct2), lambda c: (0, c))],
            out_specs=pl.BlockSpec((N * L1p, ct2), lambda c: (0, c)),
            out_shape=jax.ShapeDtypeStruct((N * L1p, cp), jnp.bfloat16),
            compiler_params=_cparams(("parallel",)),
        )(h1p, params["w1"], params["bn2_g"], params["bn2_b"])
        # identity shortcut = the ORIGINAL x (channels-last, lane-padded to cp)
        sc3 = jnp.pad(x_cl, ((0, 0), (0, cp - Cin))).reshape(N, L1, cp)

    # --- (3) conv2 + squeeze-excite + shortcut add; grid over batch (parallel) ---
    h2p3 = h2p.reshape(N, L1p, cp)
    out3 = pl.pallas_call(
        functools.partial(_conv2_se_add_kernel, l1=L1, d2=d2),
        grid=(N,),
        in_specs=[pl.BlockSpec((None, L1p, cp), lambda b: (b, 0, 0)),
                  pl.BlockSpec((3, cp, cp), lambda b: (0, 0, 0)),
                  pl.BlockSpec((cp, sq), lambda b: (0, 0)),
                  pl.BlockSpec((1, sq), lambda b: (0, 0)),
                  pl.BlockSpec((sq, cp), lambda b: (0, 0)),
                  pl.BlockSpec((1, cp), lambda b: (0, 0)),
                  pl.BlockSpec((None, L1, cp), lambda b: (b, 0, 0))],
        out_specs=pl.BlockSpec((None, L1, cp), lambda b: (b, 0, 0)),
        out_shape=jax.ShapeDtypeStruct((N, L1, cp), jnp.bfloat16),
        compiler_params=_cparams(("parallel",)),
    )(h2p3, params["w2"], params["fc1_w"], params["fc1_b"],
      params["fc2_w"], params["fc2_b"], sc3)

    # boundary: drop lane padding, back to NCL (bf16; next bn1 re-normalizes in f32)
    return jnp.transpose(out3[:, :, :planes], (0, 2, 1))


# ---------------------------------------------------------------------------

if __name__ == "__main__":
    key = jax.random.PRNGKey(0)
    pk1, pk2, xk = jax.random.split(key, 3)

    # Config 1: projection-shortcut branch (stride=2, channel change), dilations=(1, 2)
    N, Cin, planes, L = 2, 32, 64, 64
    params1, cfg1 = init_preact_block(pk1, Cin, planes, stride=2, dilations=(1, 2))
    x = jax.random.normal(xk, (N, Cin, L), jnp.float32)
    fwd1 = jax.jit(lambda a: preact_block_forward(params1, cfg1, a))
    out1 = jax.block_until_ready(fwd1(x))
    assert out1.shape == (N, planes, (L - 1) // 2 + 1), out1.shape
    assert bool(jnp.all(jnp.isfinite(out1.astype(jnp.float32))))

    # Config 2: identity-shortcut branch (stride=1, in_planes == planes), dilations=(4, 8)
    params2, cfg2 = init_preact_block(pk2, planes, planes, stride=1, dilations=(4, 8))
    fwd2 = jax.jit(lambda a: preact_block_forward(params2, cfg2, a))
    out2 = jax.block_until_ready(fwd2(out1))
    assert out2.shape == out1.shape, out2.shape
    assert bool(jnp.all(jnp.isfinite(out2.astype(jnp.float32))))

    print("KERNEL_OK")
</pallas_src>

<mosaic_0001>
module attributes {stable_mosaic.version = 11 : i64} {
  func.func @_bn_relu_pad_kernel(%arg0: i32, %arg1: memref<128x32xf32, #tpu.memory_space<vmem>>, %arg2: memref<1x32xf32, #tpu.memory_space<vmem>>, %arg3: memref<1x32xf32, #tpu.memory_space<vmem>>, %arg4: memref<132x32xbf16, #tpu.memory_space<vmem>>) attributes {dimension_semantics = [#tpu.dimension_semantics<parallel>], iteration_bounds = array<i64: 1>, scalar_prefetch = 0 : i64, scratch_operands = 0 : i64, tpu.core_type = #tpu.core_type<tc>, window_params = [{transform_indices = @transform_0, window_bounds = array<i64: 128, 32>}, {transform_indices = @transform_1, window_bounds = array<i64: 1, 32>}, {transform_indices = @transform_2, window_bounds = array<i64: 1, 32>}, {transform_indices = @transform_3, window_bounds = array<i64: 132, 32>}]} {
    %c0 = arith.constant 0 : index
    %c0_0 = arith.constant 0 : index
    %0 = vector.load %arg1[%c0, %c0_0] : memref<128x32xf32, #tpu.memory_space<vmem>>, vector<128x32xf32>
    %cst = arith.constant dense<0.000000e+00> : vector<32xf32>
    %1 = vector.multi_reduction <add>, %0, %cst [0] : vector<128x32xf32> to vector<32xf32>
    %2 = vector.shape_cast %1 : vector<32xf32> to vector<1x32xf32>
    %cst_1 = arith.constant 1.280000e+02 : f32
    %3 = vector.broadcast %cst_1 : f32 to vector<1x32xf32>
    %4 = arith.divf %2, %3 : vector<1x32xf32>
    %5 = arith.mulf %0, %0 : vector<128x32xf32>
    %cst_2 = arith.constant dense<0.000000e+00> : vector<32xf32>
    %6 = vector.multi_reduction <add>, %5, %cst_2 [0] : vector<128x32xf32> to vector<32xf32>
    %7 = vector.shape_cast %6 : vector<32xf32> to vector<1x32xf32>
    %cst_3 = arith.constant 1.280000e+02 : f32
    %8 = vector.broadcast %cst_3 : f32 to vector<1x32xf32>
    %9 = arith.divf %7, %8 : vector<1x32xf32>
    %10 = arith.mulf %4, %4 : vector<1x32xf32>
    %11 = arith.subf %9, %10 : vector<1x32xf32>
    %cst_4 = arith.constant 9.99999974E-6 : f32
    %12 = vector.broadcast %cst_4 : f32 to vector<1x32xf32>
    %13 = arith.addf %11, %12 : vector<1x32xf32>
    %14 = math.rsqrt %13 : vector<1x32xf32>
    %c0_5 = arith.constant 0 : index
    %c0_6 = arith.constant 0 : index
    %15 = vector.load %arg2[%c0_5, %c0_6] : memref<1x32xf32, #tpu.memory_space<vmem>>, vector<1x32xf32>
    %16 = arith.mulf %14, %15 : vector<1x32xf32>
    %c0_7 = arith.constant 0 : index
    %c0_8 = arith.constant 0 : index
    %17 = vector.load %arg3[%c0_7, %c0_8] : memref<1x32xf32, #tpu.memory_space<vmem>>, vector<1x32xf32>
    %18 = arith.mulf %4, %16 : vector<1x32xf32>
    %19 = arith.subf %17, %18 : vector<1x32xf32>
    %20 = vector.broadcast %16 : vector<1x32xf32> to vector<128x32xf32>
    %21 = arith.mulf %0, %20 : vector<128x32xf32>
    %22 = vector.broadcast %19 : vector<1x32xf32> to vector<128x32xf32>
    %23 = arith.addf %21, %22 : vector<128x32xf32>
    %cst_9 = arith.constant 0.000000e+00 : f32
    %24 = vector.broadcast %cst_9 : f32 to vector<128x32xf32>
    %25 = arith.maximumf %23, %24 : vector<128x32xf32>
    %26 = arith.truncf %25 : vector<128x32xf32> to vector<128x32xbf16>
    %cst_10 = arith.constant 0.000000e+00 : bf16
    %27 = vector.broadcast %cst_10 : bf16 to vector<1x32xbf16>
    %c0_11 = arith.constant 0 : index
    %c0_12 = arith.constant 0 : index
    %28 = vector.load %arg4[%c0_11, %c0_12] : memref<132x32xbf16, #tpu.memory_space<vmem>>, vector<1x32xbf16>
    tpu.vector_store %arg4[%c0_11, %c0_12], %27 {strides = array<i32>} : memref<132x32xbf16, #tpu.memory_space<vmem>>, vector<1x32xbf16>,
    %29 = vector.extract_strided_slice %26 {offsets = [0, 0], sizes = [64, 32], strides = [1, 1]} : vector<128x32xbf16> to vector<64x32xbf16>
    %c1 = arith.constant 1 : index
    %c0_13 = arith.constant 0 : index
    %30 = vector.load %arg4[%c1, %c0_13] : memref<132x32xbf16, #tpu.memory_space<vmem>>, vector<64x32xbf16>
    tpu.vector_store %arg4[%c1, %c0_13], %29 {strides = array<i32>} : memref<132x32xbf16, #tpu.memory_space<vmem>>, vector<64x32xbf16>,
    %c65 = arith.constant 65 : index
    %c0_14 = arith.constant 0 : index
    %31 = vector.load %arg4[%c65, %c0_14] : memref<132x32xbf16, #tpu.memory_space<vmem>>, vector<1x32xbf16>
    tpu.vector_store %arg4[%c65, %c0_14], %27 {strides = array<i32>} : memref<132x32xbf16, #tpu.memory_space<vmem>>, vector<1x32xbf16>,
    %c66 = arith.constant 66 : index
    %c0_15 = arith.constant 0 : index
    %32 = vector.load %arg4[%c66, %c0_15] : memref<132x32xbf16, #tpu.memory_space<vmem>>, vector<1x32xbf16>
    tpu.vector_store %arg4[%c66, %c0_15], %27 {strides = array<i32>} : memref<132x32xbf16, #tpu.memory_space<vmem>>, vector<1x32xbf16>,
    %33 = vector.extract_strided_slice %26 {offsets = [64, 0], sizes = [64, 32], strides = [1, 1]} : vector<128x32xbf16> to vector<64x32xbf16>
    %c67 = arith.constant 67 : index
    %c0_16 = arith.constant 0 : index
    %34 = vector.load %arg4[%c67, %c0_16] : memref<132x32xbf16, #tpu.memory_space<vmem>>, vector<64x32xbf16>
    tpu.vector_store %arg4[%c67, %c0_16], %33 {strides = array<i32>} : memref<132x32xbf16, #tpu.memory_space<vmem>>, vector<64x32xbf16>,
    %c131 = arith.constant 131 : index
    %c0_17 = arith.constant 0 : index
    %35 = vector.load %arg4[%c131, %c0_17] : memref<132x32xbf16, #tpu.memory_space<vmem>>, vector<1x32xbf16>
    tpu.vector_store %arg4[%c131, %c0_17], %27 {strides = array<i32>} : memref<132x32xbf16, #tpu.memory_space<vmem>>, vector<1x32xbf16>,
    return
  }
  func.func @transform_0(%arg0: i32) -> (i32, i32) {
    %c0_i32 = arith.constant 0 : i32
    %c0_i32_0 = arith.constant 0 : i32
    return %c0_i32, %arg0 : i32, i32
  }
  func.func @transform_1(%arg0: i32) -> (i32, i32) {
    %c0_i32 = arith.constant 0 : i32
    %c0_i32_0 = arith.constant 0 : i32
    return %c0_i32, %arg0 : i32, i32
  }
  func.func @transform_2(%arg0: i32) -> (i32, i32) {
    %c0_i32 = arith.constant 0 : i32
    %c0_i32_0 = arith.constant 0 : i32
    return %c0_i32, %arg0 : i32, i32
  }
  func.func @transform_3(%arg0: i32) -> (i32, i32) {
    %c0_i32 = arith.constant 0 : i32
    %c0_i32_0 = arith.constant 0 : i32
    return %c0_i32, %arg0 : i32, i32
  }
}

module attributes {stable_mosaic.version = 11 : i64} {
  func.func @_conv1_bn_relu_sc_kernel(%arg0: i32, %arg1: memref<66x32xbf16, #tpu.memory_space<vmem>>, %arg2: memref<66x32xbf16, #tpu.memory_space<vmem>>, %arg3: memref<3x32x128xbf16, #tpu.memory_space<vmem>>, %arg4: memref<1x128xf32, #tpu.memory_space<vmem>>, %arg5: memref<1x128xf32, #tpu.memory_space<vmem>>, %arg6: memref<32x128xbf16, #tpu.memory_space<vmem>>, %arg7: memref<1x128xf32, #tpu.memory_space<vmem>>, %arg8: memref<1x128xf32, #tpu.memory_space<vmem>>, %arg9: memref<72x128xbf16, #tpu.memory_space<vmem>>, %arg10: memref<64x128xbf16, #tpu.memory_space<vmem>>) attributes {dimension_semantics = [#tpu.dimension_semantics<parallel>], iteration_bounds = array<i64: 1>, scalar_prefetch = 0 : i64, scratch_operands = 0 : i64, tpu.core_type = #tpu.core_type<tc>, window_params = [{pipeline_mode = #tpu.pipeline_mode<synchronous>, transform_indices = @transform_0, window_bounds = array<i64: 66, 32>}, {pipeline_mode = #tpu.pipeline_mode<synchronous>, transform_indices = @transform_1, window_bounds = array<i64: 66, 32>}, {transform_indices = @transform_2, window_bounds = array<i64: 3, 32, 128>}, {transform_indices = @transform_3, window_bounds = array<i64: 1, 128>}, {transform_indices = @transform_4, window_bounds = array<i64: 1, 128>}, {transform_indices = @transform_5, window_bounds = array<i64: 32, 128>}, {transform_indices = @transform_6, window_bounds = array<i64: 1, 128>}, {transform_indices = @transform_7, window_bounds = array<i64: 1, 128>}, {transform_indices = @transform_8, window_bounds = array<i64: 72, 128>}, {transform_indices = @transform_9, window_bounds = array<i64: 64, 128>}]} {
    %c0 = arith.constant 0 : index
    %c0_0 = arith.constant 0 : index
    %0 = vector.load %arg1[%c0, %c0_0] : memref<66x32xbf16, #tpu.memory_space<vmem>>, vector<32x32xbf16>
    %c0_1 = arith.constant 0 : index
    %c0_2 = arith.constant 0 : index
    %c0_3 = arith.constant 0 : index
    %1 = vector.load %arg3[%c0_1, %c0_2, %c0_3] : memref<3x32x128xbf16, #tpu.memory_space<vmem>>, vector<1x32x128xbf16>
    %2 = vector.shape_cast %1 : vector<1x32x128xbf16> to vector<32x128xbf16>
    %cst = arith.constant dense<0.000000e+00> : vector<32x128xf32>
    %3 = tpu.matmul %0, %2, %cst {dimension_numbers = #tpu.dot_dimension_numbers<[1], [0], [0], [1], [0, 0, 1, 1], [], []>} : vector<32x32xbf16>, vector<32x128xbf16>, vector<32x128xf32> -> vector<32x128xf32>
    %c0_4 = arith.constant 0 : index
    %c0_5 = arith.constant 0 : index
    %4 = vector.load %arg2[%c0_4, %c0_5] : memref<66x32xbf16, #tpu.memory_space<vmem>>, vector<32x32xbf16>
    %c1 = arith.constant 1 : index
    %c0_6 = arith.constant 0 : index
    %c0_7 = arith.constant 0 : index
    %5 = vector.load %arg3[%c1, %c0_6, %c0_7] : memref<3x32x128xbf16, #tpu.memory_space<vmem>>, vector<1x32x128xbf16>
    %6 = vector.shape_cast %5 : vector<1x32x128xbf16> to vector<32x128xbf16>
    %cst_8 = arith.constant dense<0.000000e+00> : vector<32x128xf32>
    %7 = tpu.matmul %4, %6, %cst_8 {dimension_numbers = #tpu.dot_dimension_numbers<[1], [0], [0], [1], [0, 0, 1, 1], [], []>} : vector<32x32xbf16>, vector<32x128xbf16>, vector<32x128xf32> -> vector<32x128xf32>
    %8 = arith.addf %3, %7 : vector<32x128xf32>
    %c1_9 = arith.constant 1 : index
    %c0_10 = arith.constant 0 : index
    %9 = vector.load %arg1[%c1_9, %c0_10] : memref<66x32xbf16, #tpu.memory_space<vmem>>, vector<32x32xbf16>
    %c2 = arith.constant 2 : index
    %c0_11 = arith.constant 0 : index
    %c0_12 = arith.constant 0 : index
    %10 = vector.load %arg3[%c2, %c0_11, %c0_12] : memref<3x32x128xbf16, #tpu.memory_space<vmem>>, vector<1x32x128xbf16>
    %11 = vector.shape_cast %10 : vector<1x32x128xbf16> to vector<32x128xbf16>
    %cst_13 = arith.constant dense<0.000000e+00> : vector<32x128xf32>
    %12 = tpu.matmul %9, %11, %cst_13 {dimension_numbers = #tpu.dot_dimension_numbers<[1], [0], [0], [1], [0, 0, 1, 1], [], []>} : vector<32x32xbf16>, vector<32x128xbf16>, vector<32x128xf32> -> vector<32x128xf32>
    %13 = arith.addf %8, %12 : vector<32x128xf32>
    %cst_14 = arith.constant dense<0.000000e+00> : vector<128xf32>
    %14 = vector.multi_reduction <add>, %13, %cst_14 [0] : vector<32x128xf32> to vector<128xf32>
    %15 = vector.shape_cast %14 : vector<128xf32> to vector<1x128xf32>
    %16 = arith.mulf %13, %13 : vector<32x128xf32>
    %cst_15 = arith.constant dense<0.000000e+00> : vector<128xf32>
    %17 = vector.multi_reduction <add>, %16, %cst_15 [0] : vector<32x128xf32> to vector<128xf32>
    %18 = vector.shape_cast %17 : vector<128xf32> to vector<1x128xf32>
    %c0_16 = arith.constant 0 : index
    %c0_17 = arith.constant 0 : index
    %19 = vector.load %arg1[%c0_16, %c0_17] : memref<66x32xbf16, #tpu.memory_space<vmem>>, vector<32x32xbf16>
    %c0_18 = arith.constant 0 : index
    %c0_19 = arith.constant 0 : index
    %20 = vector.load %arg2[%c0_18, %c0_19] : memref<66x32xbf16, #tpu.memory_space<vmem>>, vector<32x32xbf16>
    %21 = arith.maximumf %19, %20 : vector<32x32xbf16>
    %c1_20 = arith.constant 1 : index
    %c0_21 = arith.constant 0 : index
    %22 = vector.load %arg1[%c1_20, %c0_21] : memref<66x32xbf16, #tpu.memory_space<vmem>>, vector<32x32xbf16>
    %23 = arith.maximumf %21, %22 : vector<32x32xbf16>
    %c0_22 = arith.constant 0 : index
    %c0_23 = arith.constant 0 : index
    %24 = vector.load %arg6[%c0_22, %c0_23] : memref<32x128xbf16, #tpu.memory_space<vmem>>, vector<32x128xbf16>
    %cst_24 = arith.constant dense<0.000000e+00> : vector<32x128xf32>
    %25 = tpu.matmul %23, %24, %cst_24 {dimension_numbers = #tpu.dot_dimension_numbers<[1], [0], [0], [1], [0, 0, 1, 1], [], []>} : vector<32x32xbf16>, vector<32x128xbf16>, vector<32x128xf32> -> vector<32x128xf32>
    %cst_25 = arith.constant dense<0.000000e+00> : vector<128xf32>
    %26 = vector.multi_reduction <add>, %25, %cst_25 [0] : vector<32x128xf32> to vector<128xf32>
    %27 = vector.shape_cast %26 : vector<128xf32> to vector<1x128xf32>
    %28 = arith.mulf %25, %25 : vector<32x128xf32>
    %cst_26 = arith.constant dense<0.000000e+00> : vector<128xf32>
    %29 = vector.multi_reduction <add>, %28, %cst_26 [0] : vector<32x128xf32> to vector<128xf32>
    %30 = vector.shape_cast %29 : vector<128xf32> to vector<1x128xf32>
    %c33 = arith.constant 33 : index
    %c0_27 = arith.constant 0 : index
    %31 = vector.load %arg1[%c33, %c0_27] : memref<66x32xbf16, #tpu.memory_space<vmem>>, vector<32x32xbf16>
    %c0_28 = arith.constant 0 : index
    %c0_29 = arith.constant 0 : index
    %c0_30 = arith.constant 0 : index
    %32 = vector.load %arg3[%c0_28, %c0_29, %c0_30] : memref<3x32x128xbf16, #tpu.memory_space<vmem>>, vector<1x32x128xbf16>
    %33 = vector.shape_cast %32 : vector<1x32x128xbf16> to vector<32x128xbf16>
    %cst_31 = arith.constant dense<0.000000e+00> : vector<32x128xf32>
    %34 = tpu.matmul %31, %33, %cst_31 {dimension_numbers = #tpu.dot_dimension_numbers<[1], [0], [0], [1], [0, 0, 1, 1], [], []>} : vector<32x32xbf16>, vector<32x128xbf16>, vector<32x128xf32> -> vector<32x128xf32>
    %c33_32 = arith.constant 33 : index
    %c0_33 = arith.constant 0 : index
    %35 = vector.load %arg2[%c33_32, %c0_33] : memref<66x32xbf16, #tpu.memory_space<vmem>>, vector<32x32xbf16>
    %c1_34 = arith.constant 1 : index
    %c0_35 = arith.constant 0 : index
    %c0_36 = arith.constant 0 : index
    %36 = vector.load %arg3[%c1_34, %c0_35, %c0_36] : memref<3x32x128xbf16, #tpu.memory_space<vmem>>, vector<1x32x128xbf16>
    %37 = vector.shape_cast %36 : vector<1x32x128xbf16> to vector<32x128xbf16>
    %cst_37 = arith.constant dense<0.000000e+00> : vector<32x128xf32>
    %38 = tpu.matmul %35, %37, %cst_37 {dimension_numbers = #tpu.dot_dimension_numbers<[1], [0], [0], [1], [0, 0, 1, 1], [], []>} : vector<32x32xbf16>, vector<32x128xbf16>, vector<32x128xf32> -> vector<32x128xf32>
    %39 = arith.addf %34, %38 : vector<32x128xf32>
    %c34 = arith.constant 34 : index
    %c0_38 = arith.constant 0 : index
    %40 = vector.load %arg1[%c34, %c0_38] : memref<66x32xbf16, #tpu.memory_space<vmem>>, vector<32x32xbf16>
    %c2_39 = arith.constant 2 : index
    %c0_40 = arith.constant 0 : index
    %c0_41 = arith.constant 0 : index
    %41 = vector.load %arg3[%c2_39, %c0_40, %c0_41] : memref<3x32x128xbf16, #tpu.memory_space<vmem>>, vector<1x32x128xbf16>
    %42 = vector.shape_cast %41 : vector<1x32x128xbf16> to vector<32x128xbf16>
    %cst_42 = arith.constant dense<0.000000e+00> : vector<32x128xf32>
    %43 = tpu.matmul %40, %42, %cst_42 {dimension_numbers = #tpu.dot_dimension_numbers<[1], [0], [0], [1], [0, 0, 1, 1], [], []>} : vector<32x32xbf16>, vector<32x128xbf16>, vector<32x128xf32> -> vector<32x128xf32>
    %44 = arith.addf %39, %43 : vector<32x128xf32>
    %cst_43 = arith.constant dense<0.000000e+00> : vector<128xf32>
    %45 = vector.multi_reduction <add>, %44, %cst_43 [0] : vector<32x128xf32> to vector<128xf32>
    %46 = vector.shape_cast %45 : vector<128xf32> to vector<1x128xf32>
    %47 = arith.mulf %44, %44 : vector<32x128xf32>
    %cst_44 = arith.constant dense<0.000000e+00> : vector<128xf32>
    %48 = vector.multi_reduction <add>, %47, %cst_44 [0] : vector<32x128xf32> to vector<128xf32>
    %49 = vector.shape_cast %48 : vector<128xf32> to vector<1x128xf32>
    %50 = arith.addf %15, %46 : vector<1x128xf32>
    %51 = arith.addf %18, %49 : vector<1x128xf32>
    %c33_45 = arith.constant 33 : index
    %c0_46 = arith.constant 0 : index
    %52 = vector.load %arg1[%c33_45, %c0_46] : memref<66x32xbf16, #tpu.memory_space<vmem>>, vector<32x32xbf16>
    %c33_47 = arith.constant 33 : index
    %c0_48 = arith.constant 0 : index
    %53 = vector.load %arg2[%c33_47, %c0_48] : memref<66x32xbf16, #tpu.memory_space<vmem>>, vector<32x32xbf16>
    %54 = arith.maximumf %52, %53 : vector<32x32xbf16>
    %c34_49 = arith.constant 34 : index
    %c0_50 = arith.constant 0 : index
    %55 = vector.load %arg1[%c34_49, %c0_50] : memref<66x32xbf16, #tpu.memory_space<vmem>>, vector<32x32xbf16>
    %56 = arith.maximumf %54, %55 : vector<32x32xbf16>
    %c0_51 = arith.constant 0 : index
    %c0_52 = arith.constant 0 : index
    %57 = vector.load %arg6[%c0_51, %c0_52] : memref<32x128xbf16, #tpu.memory_space<vmem>>, vector<32x128xbf16>
    %cst_53 = arith.constant dense<0.000000e+00> : vector<32x128xf32>
    %58 = tpu.matmul %56, %57, %cst_53 {dimension_numbers = #tpu.dot_dimension_numbers<[1], [0], [0], [1], [0, 0, 1, 1], [], []>} : vector<32x32xbf16>, vector<32x128xbf16>, vector<32x128xf32> -> vector<32x128xf32>
    %cst_54 = arith.constant dense<0.000000e+00> : vector<128xf32>
    %59 = vector.multi_reduction <add>, %58, %cst_54 [0] : vector<32x128xf32> to vector<128xf32>
    %60 = vector.shape_cast %59 : vector<128xf32> to vector<1x128xf32>
    %61 = arith.mulf %58, %58 : vector<32x128xf32>
    %cst_55 = arith.constant dense<0.000000e+00> : vector<128xf32>
    %62 = vector.multi_reduction <add>, %61, %cst_55 [0] : vector<32x128xf32> to vector<128xf32>
    %63 = vector.shape_cast %62 : vector<128xf32> to vector<1x128xf32>
    %64 = arith.addf %27, %60 : vector<1x128xf32>
    %65 = arith.addf %30, %63 : vector<1x128xf32>
    %cst_56 = arith.constant 6.400000e+01 : f32
    %66 = vector.broadcast %cst_56 : f32 to vector<1x128xf32>
    %67 = arith.divf %50, %66 : vector<1x128xf32>
    %cst_57 = arith.constant 6.400000e+01 : f32
    %68 = vector.broadcast %cst_57 : f32 to vector<1x128xf32>
    %69 = arith.divf %51, %68 : vector<1x128xf32>
    %70 = arith.mulf %67, %67 : vector<1x128xf32>
    %71 = arith.subf %69, %70 : vector<1x128xf32>
    %cst_58 = arith.constant 9.99999974E-6 : f32
    %72 = vector.broadcast %cst_58 : f32 to vector<1x128xf32>
    %73 = arith.addf %71, %72 : vector<1x128xf32>
    %74 = math.rsqrt %73 : vector<1x128xf32>
    %c0_59 = arith.constant 0 : index
    %c0_60 = arith.constant 0 : index
    %75 = vector.load %arg4[%c0_59, %c0_60] : memref<1x128xf32, #tpu.memory_space<vmem>>, vector<1x128xf32>
    %76 = arith.mulf %74, %75 : vector<1x128xf32>
    %c0_61 = arith.constant 0 : index
    %c0_62 = arith.constant 0 : index
    %77 = vector.load %arg5[%c0_61, %c0_62] : memref<1x128xf32, #tpu.memory_space<vmem>>, vector<1x128xf32>
    %78 = arith.mulf %67, %76 : vector<1x128xf32>
    %79 = arith.subf %77, %78 : vector<1x128xf32>
    %cst_63 = arith.constant 6.400000e+01 : f32
    %80 = vector.broadcast %cst_63 : f32 to vector<1x128xf32>
    %81 = arith.divf %64, %80 : vector<1x128xf32>
    %cst_64 = arith.constant 6.400000e+01 : f32
    %82 = vector.broadcast %cst_64 : f32 to vector<1x128xf32>
    %83 = arith.divf %65, %82 : vector<1x128xf32>
    %84 = arith.mulf %81, %81 : vector<1x128xf32>
    %85 = arith.subf %83, %84 : vector<1x128xf32>
    %cst_65 = arith.constant 9.99999974E-6 : f32
    %86 = vector.broadcast %cst_65 : f32 to vector<1x128xf32>
    %87 = arith.addf %85, %86 : vector<1x128xf32>
    %88 = math.rsqrt %87 : vector<1x128xf32>
    %c0_66 = arith.constant 0 : index
    %c0_67 = arith.constant 0 : index
    %89 = vector.load %arg7[%c0_66, %c0_67] : memref<1x128xf32, #tpu.memory_space<vmem>>, vector<1x128xf32>
    %90 = arith.mulf %88, %89 : vector<1x128xf32>
    %c0_68 = arith.constant 0 : index
    %c0_69 = arith.constant 0 : index
    %91 = vector.load %arg8[%c0_68, %c0_69] : memref<1x128xf32, #tpu.memory_space<vmem>>, vector<1x128xf32>
    %92 = arith.mulf %81, %90 : vector<1x128xf32>
    %93 = arith.subf %91, %92 : vector<1x128xf32>
    %cst_70 = arith.constant 0.000000e+00 : bf16
    %94 = vector.broadcast %cst_70 : bf16 to vector<2x128xbf16>
    %95 = vector.broadcast %76 : vector<1x128xf32> to vector<32x128xf32>
    %96 = arith.mulf %13, %95 : vector<32x128xf32>
    %97 = vector.broadcast %79 : vector<1x128xf32> to vector<32x128xf32>
    %98 = arith.addf %96, %97 : vector<32x128xf32>
    %cst_71 = arith.constant 0.000000e+00 : f32
    %99 = vector.broadcast %cst_71 : f32 to vector<32x128xf32>
    %100 = arith.maximumf %98, %99 : vector<32x128xf32>
    %101 = arith.truncf %100 : vector<32x128xf32> to vector<32x128xbf16>
    %c0_72 = arith.constant 0 : index
    %c0_73 = arith.constant 0 : index
    %102 = vector.load %arg9[%c0_72, %c0_73] : memref<72x128xbf16, #tpu.memory_space<vmem>>, vector<2x128xbf16>
    tpu.vector_store %arg9[%c0_72, %c0_73], %94 {strides = array<i32>} : memref<72x128xbf16, #tpu.memory_space<vmem>>, vector<2x128xbf16>,
    %c2_74 = arith.constant 2 : index
    %c0_75 = arith.constant 0 : index
    %103 = vector.load %arg9[%c2_74, %c0_75] : memref<72x128xbf16, #tpu.memory_space<vmem>>, vector<32x128xbf16>
    tpu.vector_store %arg9[%c2_74, %c0_75], %101 {strides = array<i32>} : memref<72x128xbf16, #tpu.memory_space<vmem>>, vector<32x128xbf16>,
    %c34_76 = arith.constant 34 : index
    %c0_77 = arith.constant 0 : index
    %104 = vector.load %arg9[%c34_76, %c0_77] : memref<72x128xbf16, #tpu.memory_space<vmem>>, vector<2x128xbf16>
    tpu.vector_store %arg9[%c34_76, %c0_77], %94 {strides = array<i32>} : memref<72x128xbf16, #tpu.memory_space<vmem>>, vector<2x128xbf16>,
    %105 = vector.broadcast %90 : vector<1x128xf32> to vector<32x128xf32>
    %106 = arith.mulf %25, %105 : vector<32x128xf32>
    %107 = vector.broadcast %93 : vector<1x128xf32> to vector<32x128xf32>
    %108 = arith.addf %106, %107 : vector<32x128xf32>
    %109 = arith.truncf %108 : vector<32x128xf32> to vector<32x128xbf16>
    %c0_78 = arith.constant 0 : index
    %c0_79 = arith.constant 0 : index
    %110 = vector.load %arg10[%c0_78, %c0_79] : memref<64x128xbf16, #tpu.memory_space<vmem>>, vector<32x128xbf16>
    tpu.vector_store %arg10[%c0_78, %c0_79], %109 {strides = array<i32>} : memref<64x128xbf16, #tpu.memory_space<vmem>>, vector<32x128xbf16>,
    %111 = vector.broadcast %76 : vector<1x128xf32> to vector<32x128xf32>
    %112 = arith.mulf %44, %111 : vector<32x128xf32>
    %113 = vector.broadcast %79 : vector<1x128xf32> to vector<32x128xf32>
    %114 = arith.addf %112, %113 : vector<32x128xf32>
    %cst_80 = arith.constant 0.000000e+00 : f32
    %115 = vector.broadcast %cst_80 : f32 to vector<32x128xf32>
    %116 = arith.maximumf %114, %115 : vector<32x128xf32>
    %117 = arith.truncf %116 : vector<32x128xf32> to vector<32x128xbf16>
    %c36 = arith.constant 36 : index
    %c0_81 = arith.constant 0 : index
    %118 = vector.load %arg9[%c36, %c0_81] : memref<72x128xbf16, #tpu.memory_space<vmem>>, vector<2x128xbf16>
    tpu.vector_store %arg9[%c36, %c0_81], %94 {strides = array<i32>} : memref<72x128xbf16, #tpu.memory_space<vmem>>, vector<2x128xbf16>,
    %c38 = arith.constant 38 : index
    %c0_82 = arith.constant 0 : index
    %119 = vector.load %arg9[%c38, %c0_82] : memref<72x128xbf16, #tpu.memory_space<vmem>>, vector<32x128xbf16>
    tpu.vector_store %arg9[%c38, %c0_82], %117 {strides = array<i32>} : memref<72x128xbf16, #tpu.memory_space<vmem>>, vector<32x128xbf16>,
    %c70 = arith.constant 70 : index
    %c0_83 = arith.constant 0 : index
    %120 = vector.load %arg9[%c70, %c0_83] : memref<72x128xbf16, #tpu.memory_space<vmem>>, vector<2x128xbf16>
    tpu.vector_store %arg9[%c70, %c0_83], %94 {strides = array<i32>} : memref<72x128xbf16, #tpu.memory_space<vmem>>, vector<2x128xbf16>,
    %121 = vector.broadcast %90 : vector<1x128xf32> to vector<32x128xf32>
    %122 = arith.mulf %58, %121 : vector<32x128xf32>
    %123 = vector.broadcast %93 : vector<1x128xf32> to vector<32x128xf32>
    %124 = arith.addf %122, %123 : vector<32x128xf32>
    %125 = arith.truncf %124 : vector<32x128xf32> to vector<32x128xbf16>
    %c32 = arith.constant 32 : index
    %c0_84 = arith.constant 0 : index
    %126 = vector.load %arg10[%c32, %c0_84] : memref<64x128xbf16, #tpu.memory_space<vmem>>, vector<32x128xbf16>
    tpu.vector_store %arg10[%c32, %c0_84], %125 {strides = array<i32>} : memref<64x128xbf16, #tpu.memory_space<vmem>>, vector<32x128xbf16>,
    return
  }
  func.func @transform_0(%arg0: i32) -> (i32, i32) {
    %c0_i32 = arith.constant 0 : i32
    %c0_i32_0 = arith.constant 0 : i32
    %c0_i32_1 = arith.constant 0 : i32
    return %c0_i32, %c0_i32_0 : i32, i32
  }
  func.func @transform_1(%arg0: i32) -> (i32, i32) {
    %c0_i32 = arith.constant 0 : i32
    %c0_i32_0 = arith.constant 0 : i32
    %c0_i32_1 = arith.constant 0 : i32
    return %c0_i32, %c0_i32_0 : i32, i32
  }
  func.func @transform_2(%arg0: i32) -> (i32, i32, i32) {
    %c0_i32 = arith.constant 0 : i32
    %c0_i32_0 = arith.constant 0 : i32
    %c0_i32_1 = arith.constant 0 : i32
    return %c0_i32, %c0_i32_0, %arg0 : i32, i32, i32
  }
  func.func @transform_3(%arg0: i32) -> (i32, i32) {
    %c0_i32 = arith.constant 0 : i32
    %c0_i32_0 = arith.constant 0 : i32
    return %c0_i32, %arg0 : i32, i32
  }
  func.func @transform_4(%arg0: i32) -> (i32, i32) {
    %c0_i32 = arith.constant 0 : i32
    %c0_i32_0 = arith.constant 0 : i32
    return %c0_i32, %arg0 : i32, i32
  }
  func.func @transform_5(%arg0: i32) -> (i32, i32) {
    %c0_i32 = arith.constant 0 : i32
    %c0_i32_0 = arith.constant 0 : i32
    return %c0_i32, %arg0 : i32, i32
  }
  func.func @transform_6(%arg0: i32) -> (i32, i32) {
    %c0_i32 = arith.constant 0 : i32
    %c0_i32_0 = arith.constant 0 : i32
    return %c0_i32, %arg0 : i32, i32
  }
  func.func @transform_7(%arg0: i32) -> (i32, i32) {
    %c0_i32 = arith.constant 0 : i32
    %c0_i32_0 = arith.constant 0 : i32
    return %c0_i32, %arg0 : i32, i32
  }
  func.func @transform_8(%arg0: i32) -> (i32, i32) {
    %c0_i32 = arith.constant 0 : i32
    %c0_i32_0 = arith.constant 0 : i32
    return %c0_i32, %arg0 : i32, i32
  }
  func.func @transform_9(%arg0: i32) -> (i32, i32) {
    %c0_i32 = arith.constant 0 : i32
    %c0_i32_0 = arith.constant 0 : i32
    return %c0_i32, %arg0 : i32, i32
  }
}

module attributes {stable_mosaic.version = 11 : i64} {
  func.func @_conv2_se_add_kernel(%arg0: i32, %arg1: memref<1x36x128xbf16, #tpu.memory_space<vmem>>, %arg2: memref<3x128x128xbf16, #tpu.memory_space<vmem>>, %arg3: memref<128x4xf32, #tpu.memory_space<vmem>>, %arg4: memref<1x4xf32, #tpu.memory_space<vmem>>, %arg5: memref<4x128xf32, #tpu.memory_space<vmem>>, %arg6: memref<1x128xf32, #tpu.memory_space<vmem>>, %arg7: memref<1x32x128xbf16, #tpu.memory_space<vmem>>, %arg8: memref<1x32x128xbf16, #tpu.memory_space<vmem>>) attributes {dimension_semantics = [#tpu.dimension_semantics<parallel>], iteration_bounds = array<i64: 2>, scalar_prefetch = 0 : i64, scratch_operands = 0 : i64, tpu.core_type = #tpu.core_type<tc>, window_params = [{transform_indices = @transform_0, window_bounds = array<i64: 1, 36, 128>}, {pipeline_mode = #tpu.pipeline_mode<synchronous>, transform_indices = @transform_1, window_bounds = array<i64: 3, 128, 128>}, {pipeline_mode = #tpu.pipeline_mode<synchronous>, transform_indices = @transform_2, window_bounds = array<i64: 128, 4>}, {pipeline_mode = #tpu.pipeline_mode<synchronous>, transform_indices = @transform_3, window_bounds = array<i64: 1, 4>}, {pipeline_mode = #tpu.pipeline_mode<synchronous>, transform_indices = @transform_4, window_bounds = array<i64: 4, 128>}, {pipeline_mode = #tpu.pipeline_mode<synchronous>, transform_indices = @transform_5, window_bounds = array<i64: 1, 128>}, {transform_indices = @transform_6, window_bounds = array<i64: 1, 32, 128>}, {transform_indices = @transform_7, window_bounds = array<i64: 1, 32, 128>}]} {
    %c0 = arith.constant 0 : index
    %c0_0 = arith.constant 0 : index
    %c0_1 = arith.constant 0 : index
    %0 = vector.load %arg1[%c0, %c0_0, %c0_1] : memref<1x36x128xbf16, #tpu.memory_space<vmem>>, vector<1x32x128xbf16>
    %1 = vector.shape_cast %0 : vector<1x32x128xbf16> to vector<32x128xbf16>
    %c0_2 = arith.constant 0 : index
    %c0_3 = arith.constant 0 : index
    %c0_4 = arith.constant 0 : index
    %2 = vector.load %arg2[%c0_2, %c0_3, %c0_4] : memref<3x128x128xbf16, #tpu.memory_space<vmem>>, vector<1x128x128xbf16>
    %3 = vector.shape_cast %2 : vector<1x128x128xbf16> to vector<128x128xbf16>
    %cst = arith.constant dense<0.000000e+00> : vector<32x128xf32>
    %4 = tpu.matmul %1, %3, %cst {dimension_numbers = #tpu.dot_dimension_numbers<[1], [0], [0], [1], [0, 0, 1, 1], [], []>} : vector<32x128xbf16>, vector<128x128xbf16>, vector<32x128xf32> -> vector<32x128xf32>
    %c0_5 = arith.constant 0 : index
    %c2 = arith.constant 2 : index
    %c0_6 = arith.constant 0 : index
    %5 = vector.load %arg1[%c0_5, %c2, %c0_6] : memref<1x36x128xbf16, #tpu.memory_space<vmem>>, vector<1x32x128xbf16>
    %6 = vector.shape_cast %5 : vector<1x32x128xbf16> to vector<32x128xbf16>
    %c1 = arith.constant 1 : index
    %c0_7 = arith.constant 0 : index
    %c0_8 = arith.constant 0 : index
    %7 = vector.load %arg2[%c1, %c0_7, %c0_8] : memref<3x128x128xbf16, #tpu.memory_space<vmem>>, vector<1x128x128xbf16>
    %8 = vector.shape_cast %7 : vector<1x128x128xbf16> to vector<128x128xbf16>
    %cst_9 = arith.constant dense<0.000000e+00> : vector<32x128xf32>
    %9 = tpu.matmul %6, %8, %cst_9 {dimension_numbers = #tpu.dot_dimension_numbers<[1], [0], [0], [1], [0, 0, 1, 1], [], []>} : vector<32x128xbf16>, vector<128x128xbf16>, vector<32x128xf32> -> vector<32x128xf32>
    %10 = arith.addf %4, %9 : vector<32x128xf32>
    %c0_10 = arith.constant 0 : index
    %c4 = arith.constant 4 : index
    %c0_11 = arith.constant 0 : index
    %11 = vector.load %arg1[%c0_10, %c4, %c0_11] : memref<1x36x128xbf16, #tpu.memory_space<vmem>>, vector<1x32x128xbf16>
    %12 = vector.shape_cast %11 : vector<1x32x128xbf16> to vector<32x128xbf16>
    %c2_12 = arith.constant 2 : index
    %c0_13 = arith.constant 0 : index
    %c0_14 = arith.constant 0 : index
    %13 = vector.load %arg2[%c2_12, %c0_13, %c0_14] : memref<3x128x128xbf16, #tpu.memory_space<vmem>>, vector<1x128x128xbf16>
    %14 = vector.shape_cast %13 : vector<1x128x128xbf16> to vector<128x128xbf16>
    %cst_15 = arith.constant dense<0.000000e+00> : vector<32x128xf32>
    %15 = tpu.matmul %12, %14, %cst_15 {dimension_numbers = #tpu.dot_dimension_numbers<[1], [0], [0], [1], [0, 0, 1, 1], [], []>} : vector<32x128xbf16>, vector<128x128xbf16>, vector<32x128xf32> -> vector<32x128xf32>
    %16 = arith.addf %10, %15 : vector<32x128xf32>
    %cst_16 = arith.constant dense<0.000000e+00> : vector<128xf32>
    %17 = vector.multi_reduction <add>, %16, %cst_16 [0] : vector<32x128xf32> to vector<128xf32>
    %18 = vector.shape_cast %17 : vector<128xf32> to vector<1x128xf32>
    %cst_17 = arith.constant 3.125000e-02 : f32
    %19 = vector.broadcast %cst_17 : f32 to vector<1x128xf32>
    %20 = arith.mulf %18, %19 : vector<1x128xf32>
    %c0_18 = arith.constant 0 : index
    %c0_19 = arith.constant 0 : index
    %21 = vector.load %arg3[%c0_18, %c0_19] : memref<128x4xf32, #tpu.memory_space<vmem>>, vector<128x4xf32>
    %cst_20 = arith.constant dense<0.000000e+00> : vector<1x4xf32>
    %22 = tpu.matmul %20, %21, %cst_20 {dimension_numbers = #tpu.dot_dimension_numbers<[1], [0], [0], [1], [0, 0, 1, 1], [], []>} : vector<1x128xf32>, vector<128x4xf32>, vector<1x4xf32> -> vector<1x4xf32>
    %c0_21 = arith.constant 0 : index
    %c0_22 = arith.constant 0 : index
    %23 = vector.load %arg4[%c0_21, %c0_22] : memref<1x4xf32, #tpu.memory_space<vmem>>, vector<1x4xf32>
    %24 = arith.addf %22, %23 : vector<1x4xf32>
    %cst_23 = arith.constant 0.000000e+00 : f32
    %25 = vector.broadcast %cst_23 : f32 to vector<1x4xf32>
    %26 = arith.maximumf %24, %25 : vector<1x4xf32>
    %c0_24 = arith.constant 0 : index
    %c0_25 = arith.constant 0 : index
    %27 = vector.load %arg5[%c0_24, %c0_25] : memref<4x128xf32, #tpu.memory_space<vmem>>, vector<4x128xf32>
    %cst_26 = arith.constant dense<0.000000e+00> : vector<1x128xf32>
    %28 = tpu.matmul %26, %27, %cst_26 {dimension_numbers = #tpu.dot_dimension_numbers<[1], [0], [0], [1], [0, 0, 1, 1], [], []>} : vector<1x4xf32>, vector<4x128xf32>, vector<1x128xf32> -> vector<1x128xf32>
    %c0_27 = arith.constant 0 : index
    %c0_28 = arith.constant 0 : index
    %29 = vector.load %arg6[%c0_27, %c0_28] : memref<1x128xf32, #tpu.memory_space<vmem>>, vector<1x128xf32>
    %30 = arith.addf %28, %29 : vector<1x128xf32>
    %cst_29 = arith.constant 0.000000e+00 : f32
    %31 = vector.broadcast %cst_29 : f32 to vector<1x128xf32>
    %32 = arith.subf %31, %30 : vector<1x128xf32>
    %33 = math.exp %32 : vector<1x128xf32>
    %cst_30 = arith.constant 1.000000e+00 : f32
    %34 = vector.broadcast %cst_30 : f32 to vector<1x128xf32>
    %35 = arith.addf %34, %33 : vector<1x128xf32>
    %cst_31 = arith.constant 1.000000e+00 : f32
    %36 = vector.broadcast %cst_31 : f32 to vector<1x128xf32>
    %37 = arith.divf %36, %35 : vector<1x128xf32>
    %38 = vector.broadcast %37 : vector<1x128xf32> to vector<32x128xf32>
    %39 = arith.mulf %16, %38 : vector<32x128xf32>
    %c0_32 = arith.constant 0 : index
    %c0_33 = arith.constant 0 : index
    %c0_34 = arith.constant 0 : index
    %40 = vector.load %arg7[%c0_32, %c0_33, %c0_34] : memref<1x32x128xbf16, #tpu.memory_space<vmem>>, vector<1x32x128xbf16>
    %41 = vector.shape_cast %40 : vector<1x32x128xbf16> to vector<32x128xbf16>
    %42 = arith.extf %41 : vector<32x128xbf16> to vector<32x128xf32>
    %43 = arith.addf %39, %42 : vector<32x128xf32>
    %44 = arith.truncf %43 : vector<32x128xf32> to vector<32x128xbf16>
    %c0_35 = arith.constant 0 : index
    %c0_36 = arith.constant 0 : index
    %c0_37 = arith.constant 0 : index
    %45 = vector.load %arg8[%c0_35, %c0_36, %c0_37] : memref<1x32x128xbf16, #tpu.memory_space<vmem>>, vector<1x32x128xbf16>
    %46 = vector.shape_cast %45 : vector<1x32x128xbf16> to vector<32x128xbf16>
    %47 = vector.shape_cast %44 : vector<32x128xbf16> to vector<1x32x128xbf16>
    tpu.vector_store %arg8[%c0_35, %c0_36, %c0_37], %47 {strides = array<i32>} : memref<1x32x128xbf16, #tpu.memory_space<vmem>>, vector<1x32x128xbf16>,
    return
  }
  func.func @transform_0(%arg0: i32) -> (i32, i32, i32) {
    %c0_i32 = arith.constant 0 : i32
    %c0_i32_0 = arith.constant 0 : i32
    %c0_i32_1 = arith.constant 0 : i32
    return %arg0, %c0_i32, %c0_i32_0 : i32, i32, i32
  }
  func.func @transform_1(%arg0: i32) -> (i32, i32, i32) {
    %c0_i32 = arith.constant 0 : i32
    %c0_i32_0 = arith.constant 0 : i32
    %c0_i32_1 = arith.constant 0 : i32
    %c0_i32_2 = arith.constant 0 : i32
    return %c0_i32, %c0_i32_0, %c0_i32_1 : i32, i32, i32
  }
  func.func @transform_2(%arg0: i32) -> (i32, i32) {
    %c0_i32 = arith.constant 0 : i32
    %c0_i32_0 = arith.constant 0 : i32
    %c0_i32_1 = arith.constant 0 : i32
    return %c0_i32, %c0_i32_0 : i32, i32
  }
  func.func @transform_3(%arg0: i32) -> (i32, i32) {
    %c0_i32 = arith.constant 0 : i32
    %c0_i32_0 = arith.constant 0 : i32
    %c0_i32_1 = arith.constant 0 : i32
    return %c0_i32, %c0_i32_0 : i32, i32
  }
  func.func @transform_4(%arg0: i32) -> (i32, i32) {
    %c0_i32 = arith.constant 0 : i32
    %c0_i32_0 = arith.constant 0 : i32
    %c0_i32_1 = arith.constant 0 : i32
    return %c0_i32, %c0_i32_0 : i32, i32
  }
  func.func @transform_5(%arg0: i32) -> (i32, i32) {
    %c0_i32 = arith.constant 0 : i32
    %c0_i32_0 = arith.constant 0 : i32
    %c0_i32_1 = arith.constant 0 : i32
    return %c0_i32, %c0_i32_0 : i32, i32
  }
  func.func @transform_6(%arg0: i32) -> (i32, i32, i32) {
    %c0_i32 = arith.constant 0 : i32
    %c0_i32_0 = arith.constant 0 : i32
    %c0_i32_1 = arith.constant 0 : i32
    return %arg0, %c0_i32, %c0_i32_0 : i32, i32, i32
  }
  func.func @transform_7(%arg0: i32) -> (i32, i32, i32) {
    %c0_i32 = arith.constant 0 : i32
    %c0_i32_0 = arith.constant 0 : i32
    %c0_i32_1 = arith.constant 0 : i32
    return %arg0, %c0_i32, %c0_i32_0 : i32, i32, i32
  }
}

</mosaic_0001>

<llo_original>
// kernel: _lambda_.3
$region0: #{_lambda_.3}
  #allocation0 [shape = 'u32[]', space=smem, size = 0x4, offset = 0x4, fixed_abs, tag = 'smem constant byte address 0x4 - core index']
  #allocation1 [shape = 'u32[72,128]{1,0:T(1,128)}', space=vmem, size = 0x9000, scoped, tag = 'internal scratch']
  %s0 = inlined_call_operand.vmem [shape: f32[128,32], index: 0, kind: input, shape index: {}]
  %s1 = inlined_call_operand.vmem [shape: f32[1,32], index: 1, kind: input, shape index: {}]
  %s2 = inlined_call_operand.vmem [shape: f32[1,32], index: 2, kind: input, shape index: {}]
  %s3 = inlined_call_operand.vmem [shape: bf16[132,32], index: 3, kind: output, shape index: {}]
  %s4 = sld [smem:[#allocation0]]
  $region22: #{_lambda_.3} parent=0
    _
  %s6 = ssub.s32 1, %s4
  %s7 = scalar_select 0, %s6, %s4
  // Predicated region
  $region2: #{_lambda_.3} parent=0 // pred_check
    _
  $region3: #{_lambda_.3} parent=0 // pred_check_branch
    %9 = sbr.rel (0) target = $region5
  $region4: #{_lambda_.3} parent=0 // pred_region
    _
  $region5: #{_lambda_.3} parent=0 // pred_fallthru
    _
  // Predicated region
  $region6: #{_lambda_.3} parent=0 // pred_check
    _
  $region7: #{_lambda_.3} parent=0 // pred_check_branch
    %11 = sbr.rel (0) target = $region9
  $region8: #{_lambda_.3} parent=0 // pred_region
    _
  $region9: #{_lambda_.3} parent=0 // pred_fallthru
    _
  // Predicated region
  $region10: #{_lambda_.3} parent=0 // pred_check
    _
  $region11: #{_lambda_.3} parent=0 // pred_check_branch
    %13 = sbr.rel (0) target = $region13
  $region12: #{_lambda_.3} parent=0 // pred_region
    _
  $region13: #{_lambda_.3} parent=0 // pred_fallthru
    _
  %v15 = vld [vmem:[%s0] sm:$0xff]
  %v16 = vld [vmem:[%s0 + $0x8] sm:$0xff]
  %v17 = vld [vmem:[%s0 + $0x10] sm:$0xff]
  %v18 = vld [vmem:[%s0 + $0x18] sm:$0xff]
  %v19 = vld [vmem:[%s0 + $0x20] sm:$0xff]
  %v20 = vld [vmem:[%s0 + $0x28] sm:$0xff]
  %v21 = vld [vmem:[%s0 + $0x30] sm:$0xff]
  %v22 = vld [vmem:[%s0 + $0x38] sm:$0xff]
  %v23 = vld [vmem:[%s0 + $0x40] sm:$0xff]
  %v24 = vld [vmem:[%s0 + $0x48] sm:$0xff]
  %v25 = vld [vmem:[%s0 + $0x50] sm:$0xff]
  %v26 = vld [vmem:[%s0 + $0x58] sm:$0xff]
  %v27 = vld [vmem:[%s0 + $0x60] sm:$0xff]
  %v28 = vld [vmem:[%s0 + $0x68] sm:$0xff]
  %v29 = vld [vmem:[%s0 + $0x70] sm:$0xff]
  %v30 = vld [vmem:[%s0 + $0x78] sm:$0xff]
  %vm31 = vcmask 261120
  %v32 = vsel %vm31, %v15, 0.0
  %v33 = vsel %vm31, %v16, 0.0
  %v34 = vadd.f32 %v32, %v33
  %v35 = vsel %vm31, %v17, 0.0
  %v36 = vadd.f32 %v34, %v35
  %v37 = vsel %vm31, %v18, 0.0
  %v38 = vadd.f32 %v36, %v37
  %v39 = vsel %vm31, %v19, 0.0
  %v40 = vadd.f32 %v38, %v39
  %v41 = vsel %vm31, %v20, 0.0
  %v42 = vadd.f32 %v40, %v41
  %v43 = vsel %vm31, %v21, 0.0
  %v44 = vadd.f32 %v42, %v43
  %v45 = vsel %vm31, %v22, 0.0
  %v46 = vadd.f32 %v44, %v45
  %v47 = vsel %vm31, %v23, 0.0
  %v48 = vadd.f32 %v46, %v47
  %v49 = vsel %vm31, %v24, 0.0
  %v50 = vadd.f32 %v48, %v49
  %v51 = vsel %vm31, %v25, 0.0
  %v52 = vadd.f32 %v50, %v51
  %v53 = vsel %vm31, %v26, 0.0
  %v54 = vadd.f32 %v52, %v53
  %v55 = vsel %vm31, %v27, 0.0
  %v56 = vadd.f32 %v54, %v55
  %v57 = vsel %vm31, %v28, 0.0
  %v58 = vadd.f32 %v56, %v57
  %v59 = vsel %vm31, %v29, 0.0
  %v60 = vadd.f32 %v58, %v59
  %v61 = vsel %vm31, %v30, 0.0
  %v62 = vadd.f32 %v60, %v61
  %v63 = vrot.slane %v62, 4
  %v64 = vadd.f32 %v62, %v63
  %v65 = vrot.slane %v64, 2
  %v66 = vadd.f32 %v64, %v65
  %v67 = vrot.slane %v66, 1
  %v68 = vadd.f32 %v66, %v67
  %v69 = vrcp.pop 128.0
  %v70 = vmul.f32 128.0, %v69
  %v71 = vsub.f32 1.0, %v70
  %v72 = vmul.f32 %v69, %v71
  %v73 = vadd.f32 %v69, %v72
  %vm74 = vweird.f32 %v69
  %v75 = vsel %vm74, %v69, %v73
  %v76 = vmul.f32 %v68, %v75
  %v77 = vmul.f32 %v15, %v15
  %v78 = vmul.f32 %v16, %v16
  %v79 = vmul.f32 %v17, %v17
  %v80 = vmul.f32 %v18, %v18
  %v81 = vmul.f32 %v19, %v19
  %v82 = vmul.f32 %v20, %v20
  %v83 = vmul.f32 %v21, %v21
  %v84 = vmul.f32 %v22, %v22
  %v85 = vmul.f32 %v23, %v23
  %v86 = vmul.f32 %v24, %v24
  %v87 = vmul.f32 %v25, %v25
  %v88 = vmul.f32 %v26, %v26
  %v89 = vmul.f32 %v27, %v27
  %v90 = vmul.f32 %v28, %v28
  %v91 = vmul.f32 %v29, %v29
  %v92 = vmul.f32 %v30, %v30
  %v93 = vsel %vm31, %v77, 0.0
  %v94 = vsel %vm31, %v78, 0.0
  %v95 = vadd.f32 %v93, %v94
  %v96 = vsel %vm31, %v79, 0.0
  %v97 = vadd.f32 %v95, %v96
  %v98 = vsel %vm31, %v80, 0.0
  %v99 = vadd.f32 %v97, %v98
  %v100 = vsel %vm31, %v81, 0.0
  %v101 = vadd.f32 %v99, %v100
  %v102 = vsel %vm31, %v82, 0.0
  %v103 = vadd.f32 %v101, %v102
  %v104 = vsel %vm31, %v83, 0.0
  %v105 = vadd.f32 %v103, %v104
  %v106 = vsel %vm31, %v84, 0.0
  %v107 = vadd.f32 %v105, %v106
  %v108 = vsel %vm31, %v85, 0.0
  %v109 = vadd.f32 %v107, %v108
  %v110 = vsel %vm31, %v86, 0.0
  %v111 = vadd.f32 %v109, %v110
  %v112 = vsel %vm31, %v87, 0.0
  %v113 = vadd.f32 %v111, %v112
  %v114 = vsel %vm31, %v88, 0.0
  %v115 = vadd.f32 %v113, %v114
  %v116 = vsel %vm31, %v89, 0.0
  %v117 = vadd.f32 %v115, %v116
  %v118 = vsel %vm31, %v90, 0.0
  %v119 = vadd.f32 %v117, %v118
  %v120 = vsel %vm31, %v91, 0.0
  %v121 = vadd.f32 %v119, %v120
  %v122 = vsel %vm31, %v92, 0.0
  %v123 = vadd.f32 %v121, %v122
  %v124 = vrot.slane %v123, 4
  %v125 = vadd.f32 %v123, %v124
  %v126 = vrot.slane %v125, 2
  %v127 = vadd.f32 %v125, %v126
  %v128 = vrot.slane %v127, 1
  %v129 = vadd.f32 %v127, %v128
  %v130 = vmul.f32 %v129, %v75
  %v131 = vmul.f32 %v76, %v76
  %v132 = vsub.f32 %v130, %v131
  %v133 = vadd.f32 %v132, 1e-05
  %v134 = vrsqrt.pop %v133
  %v135 = vmul.f32 %v134, %v133
  %v136 = vmul.f32 %v135, %v134
  %v137 = vmul.f32 0.5, %v136
  %v138 = vsub.f32 1.5, %v137
  %v139 = vmul.f32 %v134, %v138
  %vm140 = vweird.f32 %v133
  %vm141 = vweird.f32 %v134
  %vm142 = vmor %vm140, %vm141
  %v143 = vsel %vm142, %v134, %v139
  %v144 = vld [vmem:[%s1] sm:$0x1]
  %v145 = vmul.f32 %v143, %v144
  %v146 = vld [vmem:[%s2] sm:$0x1]
  %v147 = vmul.f32 %v76, %v145
  %v148 = vsub.f32 %v146, %v147
  %v149 = vperm.slane %v145, 0
  %v150 = vmul.f32 %v15, %v149
  %v151 = vmul.f32 %v16, %v149
  %v152 = vmul.f32 %v17, %v149
  %v153 = vmul.f32 %v18, %v149
  %v154 = vmul.f32 %v19, %v149
  %v155 = vmul.f32 %v20, %v149
  %v156 = vmul.f32 %v21, %v149
  %v157 = vmul.f32 %v22, %v149
  %v158 = vmul.f32 %v23, %v149
  %v159 = vmul.f32 %v24, %v149
  %v160 = vmul.f32 %v25, %v149
  %v161 = vmul.f32 %v26, %v149
  %v162 = vmul.f32 %v27, %v149
  %v163 = vmul.f32 %v28, %v149
  %v164 = vmul.f32 %v29, %v149
  %v165 = vmul.f32 %v30, %v149
  %v167 = vperm.slane %v148, 0
  %v169 = vadd.f32 %v150, %v167
  %v170 = vadd.f32 %v151, %v167
  %v171 = vadd.f32 %v152, %v167
  %v172 = vadd.f32 %v153, %v167
  %v173 = vadd.f32 %v154, %v167
  %v174 = vadd.f32 %v155, %v167
  %v175 = vadd.f32 %v156, %v167
  %v176 = vadd.f32 %v157, %v167
  %v177 = vadd.f32 %v158, %v167
  %v178 = vadd.f32 %v159, %v167
  %v179 = vadd.f32 %v160, %v167
  %v180 = vadd.f32 %v161, %v167
  %v181 = vadd.f32 %v162, %v167
  %v182 = vadd.f32 %v163, %v167
  %v183 = vadd.f32 %v164, %v167
  %v184 = vadd.f32 %v165, %v167
  %v185 = vmax.f32 %v169, 0.0
  %v186 = vmax.f32 %v170, 0.0
  %v187 = vmax.f32 %v171, 0.0
  %v188 = vmax.f32 %v172, 0.0
  %v189 = vmax.f32 %v173, 0.0
  %v190 = vmax.f32 %v174, 0.0
  %v191 = vmax.f32 %v175, 0.0
  %v192 = vmax.f32 %v176, 0.0
  %v193 = vmax.f32 %v177, 0.0
  %v194 = vmax.f32 %v178, 0.0
  %v195 = vmax.f32 %v179, 0.0
  %v196 = vmax.f32 %v180, 0.0
  %v197 = vmax.f32 %v181, 0.0
  %v198 = vmax.f32 %v182, 0.0
  %v199 = vmax.f32 %v183, 0.0
  %v200 = vmax.f32 %v184, 0.0
  %v201 = vpack.c.bf16 %v185, %v185
  %v202 = vpack.c.bf16 %v186, %v186
  %v203 = vpack.c.bf16 %v187, %v187
  %v204 = vpack.c.bf16 %v188, %v188
  %v205 = vpack.c.bf16 %v189, %v189
  %v206 = vpack.c.bf16 %v190, %v190
  %v207 = vpack.c.bf16 %v191, %v191
  %v208 = vpack.c.bf16 %v192, %v192
  %v209 = vpack.c.bf16 %v193, %v193
  %v210 = vpack.c.bf16 %v194, %v194
  %v211 = vpack.c.bf16 %v195, %v195
  %v212 = vpack.c.bf16 %v196, %v196
  %v213 = vpack.c.bf16 %v197, %v197
  %v214 = vpack.c.bf16 %v198, %v198
  %v215 = vpack.c.bf16 %v199, %v199
  %v216 = vpack.c.bf16 %v200, %v200
  %vm217 = vcmask 253952
  %vm218 = vsmask.f32 256
  %vm219 = vmand %vm217, %vm218
  %v220 = vld [vmem:[%s3] sm:$0x1]
  %v221 = vsel %vm219, 0, %v220
  %222 = vst [vmem:[%s3] sm:$0x1] %v221
  %vm223 = vsmask.f32 4368
  %vm224 = vmor %vm218, %vm223
  %v226 = vshrl.u32 %v201, 16
  %v228 = vrot.slane %v226, 7
  %v229 = vshll.u32 %v201, 16
  %v231 = vor.u32 %v228, %v229
  %v232 = vrot.slane %v228, 4
  %v234 = vshrl.u32 %v202, 16
  %v236 = vrot.slane %v234, 7
  %v237 = vshll.u32 %v202, 16
  %v239 = vor.u32 %v236, %v237
  %v240 = vsel %vm224, %v232, %v239
  %v241 = vrot.slane %v236, 4
  %v243 = vshrl.u32 %v203, 16
  %v245 = vrot.slane %v243, 7
  %v246 = vshll.u32 %v203, 16
  %v248 = vor.u32 %v245, %v246
  %v249 = vsel %vm224, %v241, %v248
  %v250 = vrot.slane %v245, 4
  %v252 = vshrl.u32 %v204, 16
  %v254 = vrot.slane %v252, 7
  %v255 = vshll.u32 %v204, 16
  %v257 = vor.u32 %v254, %v255
  %v258 = vsel %vm224, %v250, %v257
  %v259 = vrot.slane %v254, 4
  %v261 = vshrl.u32 %v205, 16
  %v263 = vrot.slane %v261, 7
  %v264 = vshll.u32 %v205, 16
  %v266 = vor.u32 %v263, %v264
  %v267 = vsel %vm224, %v259, %v266
  %v268 = vrot.slane %v263, 4
  %v270 = vshrl.u32 %v206, 16
  %v272 = vrot.slane %v270, 7
  %v273 = vshll.u32 %v206, 16
  %v275 = vor.u32 %v272, %v273
  %v276 = vsel %vm224, %v268, %v275
  %v277 = vrot.slane %v272, 4
  %v279 = vshrl.u32 %v207, 16
  %v281 = vrot.slane %v279, 7
  %v282 = vshll.u32 %v207, 16
  %v284 = vor.u32 %v281, %v282
  %v285 = vsel %vm224, %v277, %v284
  %v286 = vrot.slane %v281, 4
  %v288 = vshrl.u32 %v208, 16
  %v290 = vrot.slane %v288, 7
  %v291 = vshll.u32 %v208, 16
  %v293 = vor.u32 %v290, %v291
  %v294 = vsel %vm224, %v286, %v293
  %v295 = vrot.slane %v290, 4
  %vm305 = vcmask 257024
  %vm306 = vsmask.f32 7938
  %vm307 = vmand %vm305, %vm306
  %v308 = vld [vmem:[%s3] sm:$0xf]
  %v309 = vsel %vm307, %v231, %v308
  %310 = vst [vmem:[%s3] sm:$0xf] %v309
  %vm311 = vcmask 257024
  %312 = vst.msk [vmem:[%s3 + $0x4] sm:$0xf] %vm311, %v240
  %313 = vst.msk [vmem:[%s3 + $0x8] sm:$0xf] %vm311, %v249
  %314 = vst.msk [vmem:[%s3 + $0xc] sm:$0xf] %vm311, %v258
  %315 = vst.msk [vmem:[%s3 + $0x10] sm:$0xf] %vm311, %v267
  %316 = vst.msk [vmem:[%s3 + $0x14] sm:$0xf] %vm311, %v276
  %317 = vst.msk [vmem:[%s3 + $0x18] sm:$0xf] %vm311, %v285
  %318 = vst.msk [vmem:[%s3 + $0x1c] sm:$0xf] %vm311, %v294
  %v319 = vld [vmem:[%s3 + $0x20] sm:$0x1]
  %v320 = vsel %vm219, %v295, %v319
  %321 = vst [vmem:[%s3 + $0x20] sm:$0x1] %v320
  %vm322 = vmand %vm217, %vm306
  %v323 = vld [vmem:[%s3 + $0x20] sm:$0x1]
  %v324 = vsel %vm322, 0, %v323
  %325 = vst [vmem:[%s3 + $0x20] sm:$0x1] %v324
  %vm326 = vcmask 254977
  %vm327 = vsmask.f32 1280
  %vm328 = vmand %vm326, %vm327
  %v329 = vld [vmem:[%s3 + $0x20] sm:$0x2]
  %v330 = vsel %vm328, 0, %v329
  %331 = vst [vmem:[%s3 + $0x20] sm:$0x2] %v330
  %vm332 = vsmask.f32 5392
  %vm333 = vmor %vm327, %vm332
  %v335 = vshrl.u32 %v209, 16
  %v337 = vrot.slane %v335, 6
  %v338 = vshll.u32 %v209, 16
  %v340 = vrot.slane %v338, 7
  %v341 = vor.u32 %v337, %v340
  %v342 = vrot.slane %v341, 4
  %v344 = vshrl.u32 %v210, 16
  %v346 = vrot.slane %v344, 6
  %v347 = vshll.u32 %v210, 16
  %v349 = vrot.slane %v347, 7
  %v350 = vor.u32 %v346, %v349
  %v351 = vsel %vm333, %v342, %v350
  %v352 = vrot.slane %v350, 4
  %v354 = vshrl.u32 %v211, 16
  %v356 = vrot.slane %v354, 6
  %v357 = vshll.u32 %v211, 16
  %v359 = vrot.slane %v357, 7
  %v360 = vor.u32 %v356, %v359
  %v361 = vsel %vm333, %v352, %v360
  %v362 = vrot.slane %v360, 4
  %v364 = vshrl.u32 %v212, 16
  %v366 = vrot.slane %v364, 6
  %v367 = vshll.u32 %v212, 16
  %v369 = vrot.slane %v367, 7
  %v370 = vor.u32 %v366, %v369
  %v371 = vsel %vm333, %v362, %v370
  %v372 = vrot.slane %v370, 4
  %v374 = vshrl.u32 %v213, 16
  %v376 = vrot.slane %v374, 6
  %v377 = vshll.u32 %v213, 16
  %v379 = vrot.slane %v377, 7
  %v380 = vor.u32 %v376, %v379
  %v381 = vsel %vm333, %v372, %v380
  %v382 = vrot.slane %v380, 4
  %v384 = vshrl.u32 %v214, 16
  %v386 = vrot.slane %v384, 6
  %v387 = vshll.u32 %v214, 16
  %v389 = vrot.slane %v387, 7
  %v390 = vor.u32 %v386, %v389
  %v391 = vsel %vm333, %v382, %v390
  %v392 = vrot.slane %v390, 4
  %v394 = vshrl.u32 %v215, 16
  %v396 = vrot.slane %v394, 6
  %v397 = vshll.u32 %v215, 16
  %v399 = vrot.slane %v397, 7
  %v400 = vor.u32 %v396, %v399
  %v401 = vsel %vm333, %v392, %v400
  %v402 = vrot.slane %v400, 4
  %v404 = vshrl.u32 %v216, 16
  %v406 = vrot.slane %v404, 6
  %v407 = vshll.u32 %v216, 16
  %v409 = vrot.slane %v407, 7
  %v410 = vor.u32 %v406, %v409
  %v411 = vsel %vm333, %v402, %v410
  %v412 = vrot.slane %v410, 4
  %vm422 = vcmask 257025
  %vm423 = vsmask.f32 7942
  %vm424 = vmand %vm422, %vm423
  %v425 = vld [vmem:[%s3 + $0x20] sm:$0xe]
  %v426 = vsel %vm424, %v341, %v425
  %427 = vst [vmem:[%s3 + $0x20] sm:$0xe] %v426
  %428 = vst.msk [vmem:[%s3 + $0x24] sm:$0xf] %vm311, %v351
  %429 = vst.msk [vmem:[%s3 + $0x28] sm:$0xf] %vm311, %v361
  %430 = vst.msk [vmem:[%s3 + $0x2c] sm:$0xf] %vm311, %v371
  %431 = vst.msk [vmem:[%s3 + $0x30] sm:$0xf] %vm311, %v381
  %432 = vst.msk [vmem:[%s3 + $0x34] sm:$0xf] %vm311, %v391
  %433 = vst.msk [vmem:[%s3 + $0x38] sm:$0xf] %vm311, %v401
  %434 = vst.msk [vmem:[%s3 + $0x3c] sm:$0xf] %vm311, %v411
  %vm435 = vcmask 254976
  %vm436 = vmand %vm435, %vm327
  %v437 = vld [vmem:[%s3 + $0x40] sm:$0x3]
  %v438 = vsel %vm436, %v412, %v437
  %439 = vst [vmem:[%s3 + $0x40] sm:$0x3] %v438
  %vm440 = vmand %vm326, %vm423
  %v441 = vld [vmem:[%s3 + $0x40] sm:$0x2]
  %v442 = vsel %vm440, 0, %v441
  %443 = vst [vmem:[%s3 + $0x40] sm:$0x2] %v442
  // Predicated region
  $region14: #{_lambda_.3} parent=0 // pred_check
    _
  $region15: #{_lambda_.3} parent=0 // pred_check_branch
    %445 = sbr.rel (0) target = $region17
  $region16: #{_lambda_.3} parent=0 // pred_region
    _
  $region17: #{_lambda_.3} parent=0 // pred_fallthru
    _
  // Predicated region
  $region18: #{_lambda_.3} parent=0 // pred_check
    _
  $region19: #{_lambda_.3} parent=0 // pred_check_branch
    %447 = sbr.rel (0) target = $region21
  $region20: #{_lambda_.3} parent=0 // pred_region
    _
  $region21: #{_lambda_.3} parent=0 // pred_fallthru
    _

// kernel: _lambda_.4
$region0: #{_lambda_.4}
  #allocation0 [shape = 'u32[]', space=smem, size = 0x4, offset = 0x4, fixed_abs, tag = 'smem constant byte address 0x4 - core index']
  #allocation1 [shape = 'u32[72,128]{1,0:T(1,128)}', space=vmem, size = 0x9000, scoped, tag = 'internal scratch']
  %s0 = inlined_call_operand.vmem [shape: bf16[66,32], index: 0, kind: input, shape index: {}]
  %s1 = inlined_call_operand.vmem [shape: bf16[66,32], index: 1, kind: input, shape index: {}]
  %s2 = inlined_call_operand.vmem [shape: bf16[3,32,128], index: 2, kind: input, shape index: {}]
  %s3 = inlined_call_operand.vmem [shape: f32[1,128], index: 3, kind: input, shape index: {}, may-alias: {3,6}]
  %s4 = inlined_call_operand.vmem [shape: f32[1,128], index: 4, kind: input, shape index: {}, may-alias: {4,7}]
  %s5 = inlined_call_operand.vmem [shape: bf16[32,128], index: 5, kind: input, shape index: {}]
  %s6 = inlined_call_operand.vmem [shape: f32[1,128], index: 6, kind: input, shape index: {}, may-alias: {3,6}]
  %s7 = inlined_call_operand.vmem [shape: f32[1,128], index: 7, kind: input, shape index: {}, may-alias: {4,7}]
  %s8 = inlined_call_operand.vmem [shape: bf16[72,128], index: 8, kind: output, shape index: {0}]
  %s9 = inlined_call_operand.vmem [shape: bf16[64,128], index: 9, kind: output, shape index: {1}]
  %10 = xla_tuple %s8, %s9
  %s11 = sld [smem:[#allocation0]]
  $region50: #{_lambda_.4} parent=0
    _
  %s13 = ssub.s32 1, %s11
  %s14 = scalar_select 0, %s13, %s11
  // Predicated region
  $region2: #{_lambda_.4} parent=0 // pred_check
    _
  $region3: #{_lambda_.4} parent=0 // pred_check_branch
    %16 = sbr.rel (0) target = $region5
  $region4: #{_lambda_.4} parent=0 // pred_region
    _
  $region5: #{_lambda_.4} parent=0 // pred_fallthru
    _
  // Predicated region
  $region6: #{_lambda_.4} parent=0 // pred_check
    _
  $region7: #{_lambda_.4} parent=0 // pred_check_branch
    %18 = sbr.rel (0) target = $region9
  $region8: #{_lambda_.4} parent=0 // pred_region
    _
  $region9: #{_lambda_.4} parent=0 // pred_fallthru
    _
  // Predicated region
  $region10: #{_lambda_.4} parent=0 // pred_check
    _
  $region11: #{_lambda_.4} parent=0 // pred_check_branch
    %20 = sbr.rel (0) target = $region13
  $region12: #{_lambda_.4} parent=0 // pred_region
    _
  $region13: #{_lambda_.4} parent=0 // pred_fallthru
    _
  // Predicated region
  $region14: #{_lambda_.4} parent=0 // pred_check
    _
  $region15: #{_lambda_.4} parent=0 // pred_check_branch
    %22 = sbr.rel (0) target = $region17
  $region16: #{_lambda_.4} parent=0 // pred_region
    _
  $region17: #{_lambda_.4} parent=0 // pred_fallthru
    _
  // Predicated region
  $region18: #{_lambda_.4} parent=0 // pred_check
    _
  $region19: #{_lambda_.4} parent=0 // pred_check_branch
    %24 = sbr.rel (0) target = $region21
  $region20: #{_lambda_.4} parent=0 // pred_region
    _
  $region21: #{_lambda_.4} parent=0 // pred_fallthru
    _
  // Predicated region
  $region22: #{_lambda_.4} parent=0 // pred_check
    _
  $region23: #{_lambda_.4} parent=0 // pred_check_branch
    %26 = sbr.rel (0) target = $region25
  $region24: #{_lambda_.4} parent=0 // pred_region
    _
  $region25: #{_lambda_.4} parent=0 // pred_fallthru
    _
  // Predicated region
  $region26: #{_lambda_.4} parent=0 // pred_check
    _
  $region27: #{_lambda_.4} parent=0 // pred_check_branch
    %28 = sbr.rel (0) target = $region29
  $region28: #{_lambda_.4} parent=0 // pred_region
    _
  $region29: #{_lambda_.4} parent=0 // pred_fallthru
    _
  // Predicated region
  $region30: #{_lambda_.4} parent=0 // pred_check
    _
  $region31: #{_lambda_.4} parent=0 // pred_check_branch
    %30 = sbr.rel (0) target = $region33
  $region32: #{_lambda_.4} parent=0 // pred_region
    _
  $region33: #{_lambda_.4} parent=0 // pred_fallthru
    _
  %v32 = vld [vmem:[%s0] sm:$0xf]
  %v33 = vld [vmem:[%s0 + $0x4] sm:$0xf]
  %v34 = vld [vmem:[%s0 + $0x8] sm:$0xf]
  %v35 = vld [vmem:[%s0 + $0xc] sm:$0xf]
  %v36 = vld [vmem:[%s2] sm:$0xf]
  %v37 = vld [vmem:[%s2 + $0x4] sm:$0xf]
  %v38 = vld [vmem:[%s2 + $0x8] sm:$0xf]
  %v39 = vld [vmem:[%s2 + $0xc] sm:$0xf]
  %v40 = vld [vmem:[%s1] sm:$0xf]
  %v41 = vld [vmem:[%s1 + $0x4] sm:$0xf]
  %v42 = vld [vmem:[%s1 + $0x8] sm:$0xf]
  %v43 = vld [vmem:[%s1 + $0xc] sm:$0xf]
  %s44 = scalar_lea.vmem %s2, 16
  %v45 = vld [vmem:[%s44] sm:$0xf]
  %v46 = vld [vmem:[%s44 + $0x4] sm:$0xf]
  %v47 = vld [vmem:[%s44 + $0x8] sm:$0xf]
  %v48 = vld [vmem:[%s44 + $0xc] sm:$0xf]
  %v53 = vunpack.c.l.b16 %v40
  %v54 = vunpack.c.l.b16 %v41
  %v55 = vunpack.c.l.b16 %v42
  %v56 = vunpack.c.l.b16 %v43
  %v57 = vpack.c.b16 %v54, %v53
  %v58 = vpack.c.b16 %v56, %v55
  %v63 = vunpack.c.l.b16 %v45
  %v64 = vunpack.c.l.b16 %v46
  %v65 = vunpack.c.l.b16 %v47
  %v66 = vunpack.c.l.b16 %v48
  %v67 = vpack.c.b16 %v64, %v63
  %v68 = vpack.c.b16 %v66, %v65
  %vm71 = vcmask 261120
  %v73 = vsel %vm71, %v57, 0
  %v76 = vsel %vm71, %v58, 0
  %78 = vmatpush.bf16.msra.mxu0 0
  %79 = vmatpush.bf16.msra.mxu0 0
  %80 = vmatpush.bf16.msra.mxu0 0
  %81 = vmatpush.bf16.msra.mxu0 0
  %82 = vmatpush.bf16.msra.mxu0 0
  %83 = vmatpush.bf16.msra.mxu0 0
  %84 = vmatpush.bf16.msra.mxu0 %v68
  %85 = vmatpush.bf16.msra.mxu0 %v67
  %86 = vmatmul.bf16.gmra.mxu0 %v73
  %v87 = vpop.f32.mrf.mxu0
  %v88 = vadd.f32 0.0, %v87
  %v89 = vpop.f32.mrf.mxu0
  %v90 = vadd.f32 0.0, %v89
  %91 = vmatmul.bf16.gmra.mxu0 %v76
  %v92 = vpop.f32.mrf.mxu0
  %v93 = vadd.f32 0.0, %v92
  %v94 = vpop.f32.mrf.mxu0
  %v95 = vadd.f32 0.0, %v94
  %96 = vdwg.mxu0
  %v101 = vunpack.c.l.b16 %v32
  %v102 = vunpack.c.l.b16 %v33
  %v103 = vunpack.c.l.b16 %v34
  %v104 = vunpack.c.l.b16 %v35
  %v105 = vpack.c.b16 %v102, %v101
  %v106 = vpack.c.b16 %v104, %v103
  %v111 = vunpack.c.l.b16 %v36
  %v112 = vunpack.c.l.b16 %v37
  %v113 = vunpack.c.l.b16 %v38
  %v114 = vunpack.c.l.b16 %v39
  %v115 = vpack.c.b16 %v112, %v111
  %v116 = vpack.c.b16 %v114, %v113
  %v120 = vsel %vm71, %v105, 0
  %v123 = vsel %vm71, %v106, 0
  %125 = vmatpush.bf16.msra.mxu0 0
  %126 = vmatpush.bf16.msra.mxu0 0
  %127 = vmatpush.bf16.msra.mxu0 0
  %128 = vmatpush.bf16.msra.mxu0 0
  %129 = vmatpush.bf16.msra.mxu0 0
  %130 = vmatpush.bf16.msra.mxu0 0
  %131 = vmatpush.bf16.msra.mxu0 %v116
  %132 = vmatpush.bf16.msra.mxu0 %v115
  %133 = vmatmul.bf16.gmra.mxu0 %v120
  %v134 = vpop.f32.mrf.mxu0
  %v135 = vadd.f32 %v88, %v134
  %v136 = vpop.f32.mrf.mxu0
  %v137 = vadd.f32 %v90, %v136
  %138 = vmatmul.bf16.gmra.mxu0 %v123
  %v139 = vpop.f32.mrf.mxu0
  %v140 = vadd.f32 %v93, %v139
  %v141 = vpop.f32.mrf.mxu0
  %v142 = vadd.f32 %v95, %v141
  %143 = vdwg.mxu0
  %v144 = vld [vmem:[%s0] sm:$0xf]
  %v145 = vld [vmem:[%s0 + $0x4] sm:$0xf]
  %v146 = vld [vmem:[%s0 + $0x8] sm:$0xf]
  %v147 = vld [vmem:[%s0 + $0xc] sm:$0xf]
  %v148 = vld [vmem:[%s0 + $0x10] sm:$0x1]
  %s149 = scalar_lea.vmem %s2, 32
  %v150 = vld [vmem:[%s149] sm:$0xf]
  %v151 = vld [vmem:[%s149 + $0x4] sm:$0xf]
  %v152 = vld [vmem:[%s149 + $0x8] sm:$0xf]
  %v153 = vld [vmem:[%s149 + $0xc] sm:$0xf]
  %v159 = vunpack.c.l.b16 %v144
  %v160 = vunpack.c.l.b16 %v145
  %v161 = vunpack.c.l.b16 %v146
  %v162 = vunpack.c.l.b16 %v147
  %v163 = vunpack.c.l.b16 %v148
  %v164 = vpack.c.b16 %v160, %v159
  %v165 = vpack.c.b16 %v162, %v161
  %v166 = vpack.c.b16 %v163, %v163
  %vm167 = vsmask.f32 7424
  %v169 = vshrl.u32 %v164, 16
  %v171 = vshll.u32 %v164, 16
  %v173 = vrot.slane %v171, 1
  %v174 = vor.u32 %v169, %v173
  %v176 = vshll.u32 %v165, 16
  %v178 = vrot.slane %v176, 1
  %v179 = vsel %vm167, %v174, %v178
  %v180 = vshrl.u32 %v165, 16
  %v182 = vor.u32 %v180, %v178
  %v184 = vshll.u32 %v166, 16
  %v186 = vrot.slane %v184, 1
  %v187 = vsel %vm167, %v182, %v186
  %v192 = vunpack.c.l.b16 %v150
  %v193 = vunpack.c.l.b16 %v151
  %v194 = vunpack.c.l.b16 %v152
  %v195 = vunpack.c.l.b16 %v153
  %v196 = vpack.c.b16 %v193, %v192
  %v197 = vpack.c.b16 %v195, %v194
  %v201 = vsel %vm71, %v179, 0
  %v204 = vsel %vm71, %v187, 0
  %206 = vmatpush.bf16.msra.mxu0 0
  %207 = vmatpush.bf16.msra.mxu0 0
  %208 = vmatpush.bf16.msra.mxu0 0
  %209 = vmatpush.bf16.msra.mxu0 0
  %210 = vmatpush.bf16.msra.mxu0 0
  %211 = vmatpush.bf16.msra.mxu0 0
  %212 = vmatpush.bf16.msra.mxu0 %v197
  %213 = vmatpush.bf16.msra.mxu0 %v196
  %214 = vmatmul.bf16.gmra.mxu0 %v201
  %v215 = vpop.f32.mrf.mxu0
  %v216 = vadd.f32 0.0, %v215
  %v217 = vpop.f32.mrf.mxu0
  %v218 = vadd.f32 0.0, %v217
  %219 = vmatmul.bf16.gmra.mxu0 %v204
  %v220 = vpop.f32.mrf.mxu0
  %v221 = vadd.f32 0.0, %v220
  %v222 = vpop.f32.mrf.mxu0
  %v223 = vadd.f32 0.0, %v222
  %224 = vdwg.mxu0
  %v225 = vadd.f32 %v135, %v216
  %v226 = vadd.f32 %v137, %v218
  %v227 = vadd.f32 %v140, %v221
  %v228 = vadd.f32 %v142, %v223
  %v229 = vadd.f32 %v225, %v226
  %v230 = vadd.f32 %v229, %v227
  %v231 = vadd.f32 %v230, %v228
  %v232 = vrot.slane %v231, 4
  %v233 = vadd.f32 %v231, %v232
  %v234 = vrot.slane %v233, 2
  %v235 = vadd.f32 %v233, %v234
  %v236 = vrot.slane %v235, 1
  %v237 = vadd.f32 %v235, %v236
  %v238 = vmul.f32 %v225, %v225
  %v239 = vmul.f32 %v226, %v226
  %v240 = vmul.f32 %v227, %v227
  %v241 = vmul.f32 %v228, %v228
  %v242 = vadd.f32 %v238, %v239
  %v243 = vadd.f32 %v242, %v240
  %v244 = vadd.f32 %v243, %v241
  %v245 = vrot.slane %v244, 4
  %v246 = vadd.f32 %v244, %v245
  %v247 = vrot.slane %v246, 2
  %v248 = vadd.f32 %v246, %v247
  %v249 = vrot.slane %v248, 1
  %v250 = vadd.f32 %v248, %v249
  %v251 = vunpack.c.l.bf16 %v32
  %v252 = vunpack.c.l.bf16 %v33
  %v253 = vunpack.c.l.bf16 %v34
  %v254 = vunpack.c.l.bf16 %v35
  %v255 = vunpack.c.l.bf16 %v40
  %v256 = vunpack.c.l.bf16 %v41
  %v257 = vunpack.c.l.bf16 %v42
  %v258 = vunpack.c.l.bf16 %v43
  %v259 = vmax.f32 %v251, %v255
  %v260 = vmax.f32 %v252, %v256
  %v261 = vmax.f32 %v253, %v257
  %v262 = vmax.f32 %v254, %v258
  %v263 = vpack.c.bf16 %v259, %v259
  %v264 = vpack.c.bf16 %v260, %v260
  %v265 = vpack.c.bf16 %v261, %v261
  %v266 = vpack.c.bf16 %v262, %v262
  %v267 = vunpack.c.l.bf16 %v263
  %v268 = vunpack.c.l.bf16 %v264
  %v269 = vunpack.c.l.bf16 %v265
  %v270 = vunpack.c.l.bf16 %v266
  %v271 = vunpack.c.l.bf16 %v144
  %v272 = vunpack.c.l.bf16 %v145
  %v273 = vunpack.c.l.bf16 %v146
  %v274 = vunpack.c.l.bf16 %v147
  %v275 = vunpack.c.l.bf16 %v148
  %vm281 = vcmask 1046528
  %v282 = vrot.slane %v271, 1
  %v283 = vrot.slane %v272, 1
  %v284 = vsel %vm281, %v282, %v283
  %v285 = vrot.slane %v273, 1
  %v286 = vsel %vm281, %v283, %v285
  %v287 = vrot.slane %v274, 1
  %v288 = vsel %vm281, %v285, %v287
  %v289 = vrot.slane %v275, 1
  %v290 = vsel %vm281, %v287, %v289
  %v295 = vmax.f32 %v267, %v284
  %v296 = vmax.f32 %v268, %v286
  %v297 = vmax.f32 %v269, %v288
  %v298 = vmax.f32 %v270, %v290
  %v299 = vpack.c.bf16 %v296, %v295
  %v300 = vpack.c.bf16 %v298, %v297
  %v301 = vld [vmem:[%s5] sm:$0xf]
  %v302 = vld [vmem:[%s5 + $0x4] sm:$0xf]
  %v303 = vld [vmem:[%s5 + $0x8] sm:$0xf]
  %v304 = vld [vmem:[%s5 + $0xc] sm:$0xf]
  %v309 = vunpack.c.l.b16 %v301
  %v310 = vunpack.c.l.b16 %v302
  %v311 = vunpack.c.l.b16 %v303
  %v312 = vunpack.c.l.b16 %v304
  %v313 = vpack.c.b16 %v310, %v309
  %v314 = vpack.c.b16 %v312, %v311
  %v318 = vsel %vm71, %v299, 0
  %v321 = vsel %vm71, %v300, 0
  %323 = vmatpush.bf16.msra.mxu0 0
  %324 = vmatpush.bf16.msra.mxu0 0
  %325 = vmatpush.bf16.msra.mxu0 0
  %326 = vmatpush.bf16.msra.mxu0 0
  %327 = vmatpush.bf16.msra.mxu0 0
  %328 = vmatpush.bf16.msra.mxu0 0
  %329 = vmatpush.bf16.msra.mxu0 %v314
  %330 = vmatpush.bf16.msra.mxu0 %v313
  %331 = vmatmul.bf16.gmra.mxu0 %v318
  %v332 = vpop.f32.mrf.mxu0
  %v333 = vadd.f32 0.0, %v332
  %v334 = vpop.f32.mrf.mxu0
  %v335 = vadd.f32 0.0, %v334
  %336 = vmatmul.bf16.gmra.mxu0 %v321
  %v337 = vpop.f32.mrf.mxu0
  %v338 = vadd.f32 0.0, %v337
  %v339 = vpop.f32.mrf.mxu0
  %v340 = vadd.f32 0.0, %v339
  %341 = vdwg.mxu0
  %v342 = vadd.f32 %v333, %v335
  %v343 = vadd.f32 %v342, %v338
  %v344 = vadd.f32 %v343, %v340
  %v345 = vrot.slane %v344, 4
  %v346 = vadd.f32 %v344, %v345
  %v347 = vrot.slane %v346, 2
  %v348 = vadd.f32 %v346, %v347
  %v349 = vrot.slane %v348, 1
  %v350 = vadd.f32 %v348, %v349
  %v351 = vmul.f32 %v333, %v333
  %v352 = vmul.f32 %v335, %v335
  %v353 = vmul.f32 %v338, %v338
  %v354 = vmul.f32 %v340, %v340
  %v355 = vadd.f32 %v351, %v352
  %v356 = vadd.f32 %v355, %v353
  %v357 = vadd.f32 %v356, %v354
  %v358 = vrot.slane %v357, 4
  %v359 = vadd.f32 %v357, %v358
  %v360 = vrot.slane %v359, 2
  %v361 = vadd.f32 %v359, %v360
  %v362 = vrot.slane %v361, 1
  %v363 = vadd.f32 %v361, %v362
  %v364 = vld [vmem:[%s0 + $0x10] sm:$0xf]
  %v365 = vld [vmem:[%s0 + $0x14] sm:$0xf]
  %v366 = vld [vmem:[%s0 + $0x18] sm:$0xf]
  %v367 = vld [vmem:[%s0 + $0x1c] sm:$0xf]
  %v368 = vld [vmem:[%s0 + $0x20] sm:$0x1]
  %v369 = vld [vmem:[%s1 + $0x10] sm:$0xf]
  %v370 = vld [vmem:[%s1 + $0x14] sm:$0xf]
  %v371 = vld [vmem:[%s1 + $0x18] sm:$0xf]
  %v372 = vld [vmem:[%s1 + $0x1c] sm:$0xf]
  %v373 = vld [vmem:[%s1 + $0x20] sm:$0x1]
  %v379 = vunpack.c.l.b16 %v369
  %v380 = vunpack.c.l.b16 %v370
  %v381 = vunpack.c.l.b16 %v371
  %v382 = vunpack.c.l.b16 %v372
  %v383 = vunpack.c.l.b16 %v373
  %v384 = vpack.c.b16 %v380, %v379
  %v385 = vpack.c.b16 %v382, %v381
  %v386 = vpack.c.b16 %v383, %v383
  %v388 = vshrl.u32 %v384, 16
  %v390 = vshll.u32 %v384, 16
  %v392 = vrot.slane %v390, 1
  %v393 = vor.u32 %v388, %v392
  %v395 = vshll.u32 %v385, 16
  %v397 = vrot.slane %v395, 1
  %v398 = vsel %vm167, %v393, %v397
  %v399 = vshrl.u32 %v385, 16
  %v401 = vor.u32 %v399, %v397
  %v403 = vshll.u32 %v386, 16
  %v405 = vrot.slane %v403, 1
  %v406 = vsel %vm167, %v401, %v405
  %v408 = vsel %vm71, %v398, 0
  %v411 = vsel %vm71, %v406, 0
  %413 = vmatpush.bf16.msra.mxu0 0
  %414 = vmatpush.bf16.msra.mxu0 0
  %415 = vmatpush.bf16.msra.mxu0 0
  %416 = vmatpush.bf16.msra.mxu0 0
  %417 = vmatpush.bf16.msra.mxu0 0
  %418 = vmatpush.bf16.msra.mxu0 0
  %419 = vmatpush.bf16.msra.mxu0 %v68
  %420 = vmatpush.bf16.msra.mxu0 %v67
  %421 = vmatmul.bf16.gmra.mxu0 %v408
  %v422 = vpop.f32.mrf.mxu0
  %v423 = vadd.f32 0.0, %v422
  %v424 = vpop.f32.mrf.mxu0
  %v425 = vadd.f32 0.0, %v424
  %426 = vmatmul.bf16.gmra.mxu0 %v411
  %v427 = vpop.f32.mrf.mxu0
  %v428 = vadd.f32 0.0, %v427
  %v429 = vpop.f32.mrf.mxu0
  %v430 = vadd.f32 0.0, %v429
  %431 = vdwg.mxu0
  %v437 = vunpack.c.l.b16 %v364
  %v438 = vunpack.c.l.b16 %v365
  %v439 = vunpack.c.l.b16 %v366
  %v440 = vunpack.c.l.b16 %v367
  %v441 = vunpack.c.l.b16 %v368
  %v442 = vpack.c.b16 %v438, %v437
  %v443 = vpack.c.b16 %v440, %v439
  %v444 = vpack.c.b16 %v441, %v441
  %v446 = vshrl.u32 %v442, 16
  %v448 = vshll.u32 %v442, 16
  %v450 = vrot.slane %v448, 1
  %v451 = vor.u32 %v446, %v450
  %v453 = vshll.u32 %v443, 16
  %v455 = vrot.slane %v453, 1
  %v456 = vsel %vm167, %v451, %v455
  %v457 = vshrl.u32 %v443, 16
  %v459 = vor.u32 %v457, %v455
  %v461 = vshll.u32 %v444, 16
  %v463 = vrot.slane %v461, 1
  %v464 = vsel %vm167, %v459, %v463
  %v466 = vsel %vm71, %v456, 0
  %v469 = vsel %vm71, %v464, 0
  %471 = vmatpush.bf16.msra.mxu0 0
  %472 = vmatpush.bf16.msra.mxu0 0
  %473 = vmatpush.bf16.msra.mxu0 0
  %474 = vmatpush.bf16.msra.mxu0 0
  %475 = vmatpush.bf16.msra.mxu0 0
  %476 = vmatpush.bf16.msra.mxu0 0
  %477 = vmatpush.bf16.msra.mxu0 %v116
  %478 = vmatpush.bf16.msra.mxu0 %v115
  %479 = vmatmul.bf16.gmra.mxu0 %v466
  %v480 = vpop.f32.mrf.mxu0
  %v481 = vadd.f32 %v423, %v480
  %v482 = vpop.f32.mrf.mxu0
  %v483 = vadd.f32 %v425, %v482
  %484 = vmatmul.bf16.gmra.mxu0 %v469
  %v485 = vpop.f32.mrf.mxu0
  %v486 = vadd.f32 %v428, %v485
  %v487 = vpop.f32.mrf.mxu0
  %v488 = vadd.f32 %v430, %v487
  %489 = vdwg.mxu0
  %v490 = vld [vmem:[%s0 + $0x10] sm:$0xe]
  %v492 = vunpack.c.l.b16 %v490
  %v493 = vpack.c.b16 %v438, %v492
  %vm494 = vcmask 1046528
  %v495 = vrot.slane %v493, 1
  %v496 = vrot.slane %v443, 1
  %v497 = vsel %vm494, %v495, %v496
  %v498 = vrot.slane %v444, 1
  %v499 = vsel %vm494, %v496, %v498
  %v501 = vsel %vm71, %v497, 0
  %v504 = vsel %vm71, %v499, 0
  %506 = vmatpush.bf16.msra.mxu0 0
  %507 = vmatpush.bf16.msra.mxu0 0
  %508 = vmatpush.bf16.msra.mxu0 0
  %509 = vmatpush.bf16.msra.mxu0 0
  %510 = vmatpush.bf16.msra.mxu0 0
  %511 = vmatpush.bf16.msra.mxu0 0
  %512 = vmatpush.bf16.msra.mxu0 %v197
  %513 = vmatpush.bf16.msra.mxu0 %v196
  %514 = vmatmul.bf16.gmra.mxu0 %v501
  %v515 = vpop.f32.mrf.mxu0
  %v516 = vadd.f32 0.0, %v515
  %v517 = vpop.f32.mrf.mxu0
  %v518 = vadd.f32 0.0, %v517
  %519 = vmatmul.bf16.gmra.mxu0 %v504
  %v520 = vpop.f32.mrf.mxu0
  %v521 = vadd.f32 0.0, %v520
  %v522 = vpop.f32.mrf.mxu0
  %v523 = vadd.f32 0.0, %v522
  %524 = vdwg.mxu0
  %v525 = vadd.f32 %v481, %v516
  %v526 = vadd.f32 %v483, %v518
  %v527 = vadd.f32 %v486, %v521
  %v528 = vadd.f32 %v488, %v523
  %v529 = vadd.f32 %v525, %v526
  %v530 = vadd.f32 %v529, %v527
  %v531 = vadd.f32 %v530, %v528
  %v532 = vrot.slane %v531, 4
  %v533 = vadd.f32 %v531, %v532
  %v534 = vrot.slane %v533, 2
  %v535 = vadd.f32 %v533, %v534
  %v536 = vrot.slane %v535, 1
  %v537 = vadd.f32 %v535, %v536
  %v538 = vmul.f32 %v525, %v525
  %v539 = vmul.f32 %v526, %v526
  %v540 = vmul.f32 %v527, %v527
  %v541 = vmul.f32 %v528, %v528
  %v542 = vadd.f32 %v538, %v539
  %v543 = vadd.f32 %v542, %v540
  %v544 = vadd.f32 %v543, %v541
  %v545 = vrot.slane %v544, 4
  %v546 = vadd.f32 %v544, %v545
  %v547 = vrot.slane %v546, 2
  %v548 = vadd.f32 %v546, %v547
  %v549 = vrot.slane %v548, 1
  %v550 = vadd.f32 %v548, %v549
  %v551 = vadd.f32 %v237, %v537
  %v552 = vadd.f32 %v250, %v550
  %v553 = vunpack.c.l.bf16 %v364
  %v554 = vunpack.c.l.bf16 %v365
  %v555 = vunpack.c.l.bf16 %v366
  %v556 = vunpack.c.l.bf16 %v367
  %v557 = vunpack.c.l.bf16 %v368
  %v558 = vunpack.c.l.bf16 %v369
  %v559 = vunpack.c.l.bf16 %v370
  %v560 = vunpack.c.l.bf16 %v371
  %v561 = vunpack.c.l.bf16 %v372
  %v562 = vunpack.c.l.bf16 %v373
  %v563 = vmax.f32 %v553, %v558
  %v564 = vmax.f32 %v554, %v559
  %v565 = vmax.f32 %v555, %v560
  %v566 = vmax.f32 %v556, %v561
  %v567 = vmax.f32 %v557, %v562
  %v568 = vpack.c.bf16 %v563, %v563
  %v569 = vpack.c.bf16 %v564, %v564
  %v570 = vpack.c.bf16 %v565, %v565
  %v571 = vpack.c.bf16 %v566, %v566
  %v572 = vpack.c.bf16 %v567, %v567
  %v573 = vunpack.c.l.bf16 %v568
  %v574 = vunpack.c.l.bf16 %v569
  %v575 = vunpack.c.l.bf16 %v570
  %v576 = vunpack.c.l.bf16 %v571
  %v577 = vunpack.c.l.bf16 %v572
  %v578 = vunpack.c.l.bf16 %v490
  %v584 = vrot.slane %v578, 1
  %v585 = vrot.slane %v554, 1
  %v586 = vsel %vm281, %v584, %v585
  %v587 = vrot.slane %v555, 1
  %v588 = vsel %vm281, %v585, %v587
  %v589 = vrot.slane %v556, 1
  %v590 = vsel %vm281, %v587, %v589
  %v591 = vrot.slane %v557, 1
  %v592 = vsel %vm281, %v589, %v591
  %v598 = vmax.f32 %v573, %v586
  %v599 = vmax.f32 %v574, %v588
  %v600 = vmax.f32 %v575, %v590
  %v601 = vmax.f32 %v576, %v592
  %v602 = vmax.f32 %v577, %v591
  %v603 = vpack.c.bf16 %v599, %v598
  %v604 = vpack.c.bf16 %v601, %v600
  %v605 = vpack.c.bf16 %v602, %v602
  %v607 = vshrl.u32 %v603, 16
  %v609 = vshll.u32 %v603, 16
  %v611 = vrot.slane %v609, 1
  %v612 = vor.u32 %v607, %v611
  %v614 = vshll.u32 %v604, 16
  %v616 = vrot.slane %v614, 1
  %v617 = vsel %vm167, %v612, %v616
  %v618 = vshrl.u32 %v604, 16
  %v620 = vor.u32 %v618, %v616
  %v622 = vshll.u32 %v605, 16
  %v624 = vrot.slane %v622, 1
  %v625 = vsel %vm167, %v620, %v624
  %v627 = vsel %vm71, %v617, 0
  %v630 = vsel %vm71, %v625, 0
  %632 = vmatpush.bf16.msra.mxu0 0
  %633 = vmatpush.bf16.msra.mxu0 0
  %634 = vmatpush.bf16.msra.mxu0 0
  %635 = vmatpush.bf16.msra.mxu0 0
  %636 = vmatpush.bf16.msra.mxu0 0
  %637 = vmatpush.bf16.msra.mxu0 0
  %638 = vmatpush.bf16.msra.mxu0 %v314
  %639 = vmatpush.bf16.msra.mxu0 %v313
  %640 = vmatmul.bf16.gmra.mxu0 %v627
  %v641 = vpop.f32.mrf.mxu0
  %v642 = vadd.f32 0.0, %v641
  %v643 = vpop.f32.mrf.mxu0
  %v644 = vadd.f32 0.0, %v643
  %645 = vmatmul.bf16.gmra.mxu0 %v630
  %v646 = vpop.f32.mrf.mxu0
  %v647 = vadd.f32 0.0, %v646
  %v648 = vpop.f32.mrf.mxu0
  %v649 = vadd.f32 0.0, %v648
  %650 = vdwg.mxu0
  %v651 = vadd.f32 %v642, %v644
  %v652 = vadd.f32 %v651, %v647
  %v653 = vadd.f32 %v652, %v649
  %v654 = vrot.slane %v653, 4
  %v655 = vadd.f32 %v653, %v654
  %v656 = vrot.slane %v655, 2
  %v657 = vadd.f32 %v655, %v656
  %v658 = vrot.slane %v657, 1
  %v659 = vadd.f32 %v657, %v658
  %v660 = vmul.f32 %v642, %v642
  %v661 = vmul.f32 %v644, %v644
  %v662 = vmul.f32 %v647, %v647
  %v663 = vmul.f32 %v649, %v649
  %v664 = vadd.f32 %v660, %v661
  %v665 = vadd.f32 %v664, %v662
  %v666 = vadd.f32 %v665, %v663
  %v667 = vrot.slane %v666, 4
  %v668 = vadd.f32 %v666, %v667
  %v669 = vrot.slane %v668, 2
  %v670 = vadd.f32 %v668, %v669
  %v671 = vrot.slane %v670, 1
  %v672 = vadd.f32 %v670, %v671
  %v673 = vadd.f32 %v350, %v659
  %v674 = vadd.f32 %v363, %v672
  %v675 = vrcp.pop 64.0
  %v676 = vmul.f32 64.0, %v675
  %v677 = vsub.f32 1.0, %v676
  %v678 = vmul.f32 %v675, %v677
  %v679 = vadd.f32 %v675, %v678
  %vm680 = vweird.f32 %v675
  %v681 = vsel %vm680, %v675, %v679
  %v682 = vmul.f32 %v551, %v681
  %v683 = vmul.f32 %v552, %v681
  %v684 = vmul.f32 %v682, %v682
  %v685 = vsub.f32 %v683, %v684
  %v686 = vadd.f32 %v685, 1e-05
  %v687 = vrsqrt.pop %v686
  %v688 = vmul.f32 %v687, %v686
  %v689 = vmul.f32 %v688, %v687
  %v690 = vmul.f32 0.5, %v689
  %v691 = vsub.f32 1.5, %v690
  %v692 = vmul.f32 %v687, %v691
  %vm693 = vweird.f32 %v686
  %vm694 = vweird.f32 %v687
  %vm695 = vmor %vm693, %vm694
  %v696 = vsel %vm695, %v687, %v692
  %v697 = vld [vmem:[%s3] sm:$0x1]
  %v698 = vmul.f32 %v696, %v697
  %v699 = vld [vmem:[%s4] sm:$0x1]
  %v700 = vmul.f32 %v682, %v698
  %v701 = vsub.f32 %v699, %v700
  %v702 = vmul.f32 %v673, %v681
  %v703 = vmul.f32 %v674, %v681
  %v704 = vmul.f32 %v702, %v702
  %v705 = vsub.f32 %v703, %v704
  %v706 = vadd.f32 %v705, 1e-05
  %v707 = vrsqrt.pop %v706
  %v708 = vmul.f32 %v707, %v706
  %v709 = vmul.f32 %v708, %v707
  %v710 = vmul.f32 0.5, %v709
  %v711 = vsub.f32 1.5, %v710
  %v712 = vmul.f32 %v707, %v711
  %vm713 = vweird.f32 %v706
  %vm714 = vweird.f32 %v707
  %vm715 = vmor %vm713, %vm714
  %v716 = vsel %vm715, %v707, %v712
  %v717 = vld [vmem:[%s6] sm:$0x1]
  %v718 = vmul.f32 %v716, %v717
  %v719 = vld [vmem:[%s7] sm:$0x1]
  %v720 = vmul.f32 %v702, %v718
  %v721 = vsub.f32 %v719, %v720
  %v722 = vperm.slane %v698, 0
  %v723 = vmul.f32 %v225, %v722
  %v724 = vmul.f32 %v226, %v722
  %v725 = vmul.f32 %v227, %v722
  %v726 = vmul.f32 %v228, %v722
  %v728 = vperm.slane %v701, 0
  %v730 = vadd.f32 %v723, %v728
  %v731 = vadd.f32 %v724, %v728
  %v732 = vadd.f32 %v725, %v728
  %v733 = vadd.f32 %v726, %v728
  %v734 = vmax.f32 %v730, 0.0
  %v735 = vmax.f32 %v731, 0.0
  %v736 = vmax.f32 %v732, 0.0
  %v737 = vmax.f32 %v733, 0.0
  %v738 = vpack.c.bf16 %v734, %v734
  %v739 = vpack.c.bf16 %v735, %v735
  %v740 = vpack.c.bf16 %v736, %v736
  %v741 = vpack.c.bf16 %v737, %v737
  %742 = vst [vmem:[%s8] sm:$0x1] 0
  %vm747 = vcmask 1040384
  %vm748 = vcmask 1044484
  %vm749 = vmor %vm747, %vm748
  %v750 = vrot.slane %v738, 7
  %v751 = vrot.slane %v750, 4
  %v752 = vrot.slane %v739, 7
  %v753 = vsel %vm749, %v751, %v752
  %v754 = vrot.slane %v752, 4
  %v755 = vrot.slane %v740, 7
  %v756 = vsel %vm749, %v754, %v755
  %v757 = vrot.slane %v755, 4
  %v758 = vrot.slane %v741, 7
  %v759 = vsel %vm749, %v757, %v758
  %v760 = vrot.slane %v758, 4
  %766 = vst [vmem:[%s8] sm:$0xe] %v750
  %767 = vst [vmem:[%s8 + $0x4] sm:$0xf] %v753
  %768 = vst [vmem:[%s8 + $0x8] sm:$0xf] %v756
  %769 = vst [vmem:[%s8 + $0xc] sm:$0xf] %v759
  %770 = vst [vmem:[%s8 + $0x10] sm:$0x1] %v760
  %771 = vst [vmem:[%s8 + $0x10] sm:$0x2] 0
  %v772 = vperm.slane %v718, 0
  %v773 = vmul.f32 %v333, %v772
  %v774 = vmul.f32 %v335, %v772
  %v775 = vmul.f32 %v338, %v772
  %v776 = vmul.f32 %v340, %v772
  %v778 = vperm.slane %v721, 0
  %v780 = vadd.f32 %v773, %v778
  %v781 = vadd.f32 %v774, %v778
  %v782 = vadd.f32 %v775, %v778
  %v783 = vadd.f32 %v776, %v778
  %v784 = vpack.c.bf16 %v780, %v780
  %v785 = vpack.c.bf16 %v781, %v781
  %v786 = vpack.c.bf16 %v782, %v782
  %v787 = vpack.c.bf16 %v783, %v783
  %788 = vst [vmem:[%s9] sm:$0xf] %v784
  %789 = vst [vmem:[%s9 + $0x4] sm:$0xf] %v785
  %790 = vst [vmem:[%s9 + $0x8] sm:$0xf] %v786
  %791 = vst [vmem:[%s9 + $0xc] sm:$0xf] %v787
  %v792 = vmul.f32 %v525, %v722
  %v793 = vmul.f32 %v526, %v722
  %v794 = vmul.f32 %v527, %v722
  %v795 = vmul.f32 %v528, %v722
  %v796 = vadd.f32 %v792, %v728
  %v797 = vadd.f32 %v793, %v728
  %v798 = vadd.f32 %v794, %v728
  %v799 = vadd.f32 %v795, %v728
  %v800 = vmax.f32 %v796, 0.0
  %v801 = vmax.f32 %v797, 0.0
  %v802 = vmax.f32 %v798, 0.0
  %v803 = vmax.f32 %v799, 0.0
  %v804 = vpack.c.bf16 %v800, %v800
  %v805 = vpack.c.bf16 %v801, %v801
  %v806 = vpack.c.bf16 %v802, %v802
  %v807 = vpack.c.bf16 %v803, %v803
  %808 = vst [vmem:[%s8 + $0x10] sm:$0x4] 0
  %vm813 = vcmask 1042432
  %vm814 = vcmask 1046532
  %vm815 = vmor %vm813, %vm814
  %v816 = vrot.slane %v804, 5
  %v817 = vrot.slane %v816, 4
  %v818 = vrot.slane %v805, 5
  %v819 = vsel %vm815, %v817, %v818
  %v820 = vrot.slane %v818, 4
  %v821 = vrot.slane %v806, 5
  %v822 = vsel %vm815, %v820, %v821
  %v823 = vrot.slane %v821, 4
  %v824 = vrot.slane %v807, 5
  %v825 = vsel %vm815, %v823, %v824
  %v826 = vrot.slane %v824, 4
  %832 = vst [vmem:[%s8 + $0x10] sm:$0x8] %v816
  %833 = vst [vmem:[%s8 + $0x14] sm:$0xf] %v819
  %834 = vst [vmem:[%s8 + $0x18] sm:$0xf] %v822
  %835 = vst [vmem:[%s8 + $0x1c] sm:$0xf] %v825
  %836 = vst [vmem:[%s8 + $0x20] sm:$0x7] %v826
  %837 = vst [vmem:[%s8 + $0x20] sm:$0x8] 0
  %v838 = vmul.f32 %v642, %v772
  %v839 = vmul.f32 %v644, %v772
  %v840 = vmul.f32 %v647, %v772
  %v841 = vmul.f32 %v649, %v772
  %v842 = vadd.f32 %v838, %v778
  %v843 = vadd.f32 %v839, %v778
  %v844 = vadd.f32 %v840, %v778
  %v845 = vadd.f32 %v841, %v778
  %v846 = vpack.c.bf16 %v842, %v842
  %v847 = vpack.c.bf16 %v843, %v843
  %v848 = vpack.c.bf16 %v844, %v844
  %v849 = vpack.c.bf16 %v845, %v845
  %850 = vst [vmem:[%s9 + $0x10] sm:$0xf] %v846
  %851 = vst [vmem:[%s9 + $0x14] sm:$0xf] %v847
  %852 = vst [vmem:[%s9 + $0x18] sm:$0xf] %v848
  %853 = vst [vmem:[%s9 + $0x1c] sm:$0xf] %v849
  // Predicated region
  $region34: #{_lambda_.4} parent=0 // pred_check
    _
  $region35: #{_lambda_.4} parent=0 // pred_check_branch
    %855 = sbr.rel (0) target = $region37
  $region36: #{_lambda_.4} parent=0 // pred_region
    _
  $region37: #{_lambda_.4} parent=0 // pred_fallthru
    _
  // Predicated region
  $region38: #{_lambda_.4} parent=0 // pred_check
    _
  $region39: #{_lambda_.4} parent=0 // pred_check_branch
    %857 = sbr.rel (0) target = $region41
  $region40: #{_lambda_.4} parent=0 // pred_region
    _
  $region41: #{_lambda_.4} parent=0 // pred_fallthru
    _
  // Predicated region
  $region42: #{_lambda_.4} parent=0 // pred_check
    _
  $region43: #{_lambda_.4} parent=0 // pred_check_branch
    %859 = sbr.rel (0) target = $region45
  $region44: #{_lambda_.4} parent=0 // pred_region
    _
  $region45: #{_lambda_.4} parent=0 // pred_fallthru
    _
  // Predicated region
  $region46: #{_lambda_.4} parent=0 // pred_check
    _
  $region47: #{_lambda_.4} parent=0 // pred_check_branch
    %861 = sbr.rel (0) target = $region49
  $region48: #{_lambda_.4} parent=0 // pred_region
    _
  $region49: #{_lambda_.4} parent=0 // pred_fallthru
    _

// kernel: _lambda_.5
$region0: #{_lambda_.5}
  #allocation0 [shape = 'u32[]', space=smem, size = 0x4, offset = 0x4, fixed_abs, tag = 'smem constant byte address 0x4 - core index']
  #allocation1 [shape = 'u32[72,128]{1,0:T(1,128)}', space=vmem, size = 0x9000, scoped, tag = 'internal scratch']
  %s0 = inlined_call_operand.vmem [shape: bf16[2,36,128], index: 0, kind: input, shape index: {}]
  %s1 = inlined_call_operand.vmem [shape: bf16[3,128,128], index: 1, kind: input, shape index: {}]
  %s2 = inlined_call_operand.vmem [shape: f32[128,4], index: 2, kind: input, shape index: {}]
  %s3 = inlined_call_operand.vmem [shape: f32[1,4], index: 3, kind: input, shape index: {}]
  %s4 = inlined_call_operand.vmem [shape: f32[4,128], index: 4, kind: input, shape index: {}]
  %s5 = inlined_call_operand.vmem [shape: f32[1,128], index: 5, kind: input, shape index: {}]
  %s6 = inlined_call_operand.vmem [shape: bf16[2,32,128], index: 6, kind: input, shape index: {}]
  %s7 = inlined_call_operand.vmem [shape: bf16[2,32,128], index: 7, kind: output, shape index: {}]
  %s8 = sld [smem:[#allocation0]]
  $region61: #{_lambda_.5} parent=0
    _
  %s10 = ssub.s32 1, %s8
  %s11 = scalar_select 0, %s10, %s8
  loop: start=0, step=1, limit=4
  $region2: #{_lambda_.5} parent=0 // loop_pre_header
    _
  $region3: #{_lambda_.5} parent=0 // loop_header
    %s13 = sphi 0, %s17
    %p14 = scmp.ge.s32.totalorder %s13, 4
    %s23 = sphi 0, %s25
    %s26 = sphi 0, %s23
    %s27 = sphi 0, %s26
    %s43 = sphi 0, %s27
    %s47 = sphi 0, %s47
    %s49 = sphi 0, %s47
    %s50 = sphi 0, %s49
    %s64 = sphi 0, %s50
    %s68 = sphi 0, %s68
    %s70 = sphi 0, %s68
    %s71 = sphi 0, %s70
    %s85 = sphi 0, %s71
    %s89 = sphi 0, %s89
    %s91 = sphi 0, %s89
    %s92 = sphi 0, %s91
    %s106 = sphi 0, %s92
    %s110 = sphi 0, %s110
    %s112 = sphi 0, %s110
    %s113 = sphi 0, %s112
    %s127 = sphi 0, %s113
    %s131 = sphi 0, %s131
    %s133 = sphi 0, %s131
    %s134 = sphi 0, %s133
    %s148 = sphi 0, %s134
    %s154 = sphi 0, %s156
    %s157 = sphi 0, %s154
    %s158 = sphi 0, %s157
    %s174 = sphi 0, %s158
    %s180 = sphi 0, %s182
    %s183 = sphi 0, %s180
    %s184 = sphi 0, %s183
    %s200 = sphi 0, %s184
  $region4: #{_lambda_.5} parent=0 // loop_header_branch
    %16 = sbr.rel (%p14) target = $region8
  $region5: #{_lambda_.5} parent=0 // loop_body
    %s18 = ssub.s32 %s13, 1
    %s19 = ssub.s32 %s13, 2
    %s20 = sadd.s32 %s13, 1
    %s21 = ssub.s32 %s13, %s20
    %p22 = scmp.eq.s32.totalorder %s21, 0
    %s24 = sadd.s32 %s23, 1
    %s25 = scalar_select %p22, %s23, %s24
    %p28 = pneg %p22
    %p29 = scmp.eq.s32.totalorder %s13, 1
    %p30 = por %p28, %p29
    %p31 = scmp.ne.s32.totalorder %s23, %s26
    %p32 = scmp.eq.s32.totalorder %s13, 0
    %p33 = por %p31, %p32
    %p34 = scmp.ne.s32.totalorder %s23, %s26
    %p35 = scmp.eq.s32.totalorder %s18, 1
    %p36 = por %p34, %p35
    %p37 = scmp.ne.s32.totalorder %s26, %s27
    %p38 = scmp.eq.s32.totalorder %s18, 0
    %p39 = por %p37, %p38
    %p40 = scmp.ne.s32.totalorder %s26, %s27
    %p41 = scmp.eq.s32.totalorder %s19, 1
    %p42 = por %p40, %p41
    %p44 = scmp.ne.s32.totalorder %s27, %s43
    %p45 = scmp.eq.s32.totalorder %s19, 0
    %p46 = por %p44, %p45
    %s48 = sadd.s32 %s47, 1
    %p51 = scmp.eq.s32.totalorder %s13, 1
    %p52 = scmp.ne.s32.totalorder %s47, %s49
    %p53 = scmp.eq.s32.totalorder %s13, 0
    %p54 = por %p52, %p53
    %p55 = scmp.ne.s32.totalorder %s47, %s49
    %p56 = scmp.eq.s32.totalorder %s18, 1
    %p57 = por %p55, %p56
    %p58 = scmp.ne.s32.totalorder %s49, %s50
    %p59 = scmp.eq.s32.totalorder %s18, 0
    %p60 = por %p58, %p59
    %p61 = scmp.ne.s32.totalorder %s49, %s50
    %p62 = scmp.eq.s32.totalorder %s19, 1
    %p63 = por %p61, %p62
    %p65 = scmp.ne.s32.totalorder %s50, %s64
    %p66 = scmp.eq.s32.totalorder %s19, 0
    %p67 = por %p65, %p66
    %s69 = sadd.s32 %s68, 1
    %p72 = scmp.eq.s32.totalorder %s13, 1
    %p73 = scmp.ne.s32.totalorder %s68, %s70
    %p74 = scmp.eq.s32.totalorder %s13, 0
    %p75 = por %p73, %p74
    %p76 = scmp.ne.s32.totalorder %s68, %s70
    %p77 = scmp.eq.s32.totalorder %s18, 1
    %p78 = por %p76, %p77
    %p79 = scmp.ne.s32.totalorder %s70, %s71
    %p80 = scmp.eq.s32.totalorder %s18, 0
    %p81 = por %p79, %p80
    %p82 = scmp.ne.s32.totalorder %s70, %s71
    %p83 = scmp.eq.s32.totalorder %s19, 1
    %p84 = por %p82, %p83
    %p86 = scmp.ne.s32.totalorder %s71, %s85
    %p87 = scmp.eq.s32.totalorder %s19, 0
    %p88 = por %p86, %p87
    %s90 = sadd.s32 %s89, 1
    %p93 = scmp.eq.s32.totalorder %s13, 1
    %p94 = scmp.ne.s32.totalorder %s89, %s91
    %p95 = scmp.eq.s32.totalorder %s13, 0
    %p96 = por %p94, %p95
    %p97 = scmp.ne.s32.totalorder %s89, %s91
    %p98 = scmp.eq.s32.totalorder %s18, 1
    %p99 = por %p97, %p98
    %p100 = scmp.ne.s32.totalorder %s91, %s92
    %p101 = scmp.eq.s32.totalorder %s18, 0
    %p102 = por %p100, %p101
    %p103 = scmp.ne.s32.totalorder %s91, %s92
    %p104 = scmp.eq.s32.totalorder %s19, 1
    %p105 = por %p103, %p104
    %p107 = scmp.ne.s32.totalorder %s92, %s106
    %p108 = scmp.eq.s32.totalorder %s19, 0
    %p109 = por %p107, %p108
    %s111 = sadd.s32 %s110, 1
    %p114 = scmp.eq.s32.totalorder %s13, 1
    %p115 = scmp.ne.s32.totalorder %s110, %s112
    %p116 = scmp.eq.s32.totalorder %s13, 0
    %p117 = por %p115, %p116
    %p118 = scmp.ne.s32.totalorder %s110, %s112
    %p119 = scmp.eq.s32.totalorder %s18, 1
    %p120 = por %p118, %p119
    %p121 = scmp.ne.s32.totalorder %s112, %s113
    %p122 = scmp.eq.s32.totalorder %s18, 0
    %p123 = por %p121, %p122
    %p124 = scmp.ne.s32.totalorder %s112, %s113
    %p125 = scmp.eq.s32.totalorder %s19, 1
    %p126 = por %p124, %p125
    %p128 = scmp.ne.s32.totalorder %s113, %s127
    %p129 = scmp.eq.s32.totalorder %s19, 0
    %p130 = por %p128, %p129
    %s132 = sadd.s32 %s131, 1
    %p135 = scmp.eq.s32.totalorder %s13, 1
    %p136 = scmp.ne.s32.totalorder %s131, %s133
    %p137 = scmp.eq.s32.totalorder %s13, 0
    %p138 = por %p136, %p137
    %p139 = scmp.ne.s32.totalorder %s131, %s133
    %p140 = scmp.eq.s32.totalorder %s18, 1
    %p141 = por %p139, %p140
    %p142 = scmp.ne.s32.totalorder %s133, %s134
    %p143 = scmp.eq.s32.totalorder %s18, 0
    %p144 = por %p142, %p143
    %p145 = scmp.ne.s32.totalorder %s133, %s134
    %p146 = scmp.eq.s32.totalorder %s19, 1
    %p147 = por %p145, %p146
    %p149 = scmp.ne.s32.totalorder %s134, %s148
    %p150 = scmp.eq.s32.totalorder %s19, 0
    %p151 = por %p149, %p150
    %s152 = ssub.s32 %s13, %s20
    %p153 = scmp.eq.s32.totalorder %s152, 0
    %s155 = sadd.s32 %s154, 1
    %s156 = scalar_select %p153, %s154, %s155
    %p159 = pneg %p153
    %p160 = scmp.eq.s32.totalorder %s13, 1
    %p161 = por %p159, %p160
    %p162 = scmp.ne.s32.totalorder %s154, %s157
    %p163 = scmp.eq.s32.totalorder %s13, 0
    %p164 = por %p162, %p163
    %p165 = scmp.ne.s32.totalorder %s154, %s157
    %p166 = scmp.eq.s32.totalorder %s18, 1
    %p167 = por %p165, %p166
    %p168 = scmp.ne.s32.totalorder %s157, %s158
    %p169 = scmp.eq.s32.totalorder %s18, 0
    %p170 = por %p168, %p169
    %p171 = scmp.ne.s32.totalorder %s157, %s158
    %p172 = scmp.eq.s32.totalorder %s19, 1
    %p173 = por %p171, %p172
    %p175 = scmp.ne.s32.totalorder %s158, %s174
    %p176 = scmp.eq.s32.totalorder %s19, 0
    %p177 = por %p175, %p176
    %s178 = ssub.s32 %s13, %s20
    %p179 = scmp.eq.s32.totalorder %s178, 0
    %s181 = sadd.s32 %s180, 1
    %s182 = scalar_select %p179, %s180, %s181
    %p185 = pneg %p179
    %p186 = scmp.eq.s32.totalorder %s13, 1
    %p187 = por %p185, %p186
    %p188 = scmp.ne.s32.totalorder %s180, %s183
    %p189 = scmp.eq.s32.totalorder %s13, 0
    %p190 = por %p188, %p189
    %p191 = scmp.ne.s32.totalorder %s180, %s183
    %p192 = scmp.eq.s32.totalorder %s18, 1
    %p193 = por %p191, %p192
    %p194 = scmp.ne.s32.totalorder %s183, %s184
    %p195 = scmp.eq.s32.totalorder %s18, 0
    %p196 = por %p194, %p195
    %p197 = scmp.ne.s32.totalorder %s183, %s184
    %p198 = scmp.eq.s32.totalorder %s19, 1
    %p199 = por %p197, %p198
    %p201 = scmp.ne.s32.totalorder %s184, %s200
    %p202 = scmp.eq.s32.totalorder %s19, 0
    %p203 = por %p201, %p202
    %p204 = scmp.le.s32.totalorder 1, %s13
    %p205 = scmp.lt.s32.totalorder %s13, 3
    %p206 = pnand %p204, %p205
    %p207 = pneg %p206
    // Predicated region
    $region9: #{_lambda_.5} parent=5 // pred_check
      _
    $region10: #{_lambda_.5} parent=5 // pred_check_branch
      %209 = sbr.rel (%p206) target = $region12
    $region11: #{_lambda_.5} parent=5 // pred_region
      %s210 = ssub.s32 %s13, 1
      // Predicated region
      $region13: #{_lambda_.5} parent=11 // pred_check
        %p211 = pneg %p60
      $region14: #{_lambda_.5} parent=11 // pred_check_branch
        %213 = sbr.rel (%p211) target = $region16
      $region15: #{_lambda_.5} parent=11 // pred_region
        _
      $region16: #{_lambda_.5} parent=11 // pred_fallthru
        _
      // Predicated region
      $region17: #{_lambda_.5} parent=11 // pred_check
        %p214 = pneg %p81
      $region18: #{_lambda_.5} parent=11 // pred_check_branch
        %216 = sbr.rel (%p214) target = $region20
      $region19: #{_lambda_.5} parent=11 // pred_region
        _
      $region20: #{_lambda_.5} parent=11 // pred_fallthru
        _
      // Predicated region
      $region21: #{_lambda_.5} parent=11 // pred_check
        %p217 = pneg %p102
      $region22: #{_lambda_.5} parent=11 // pred_check_branch
        %219 = sbr.rel (%p217) target = $region24
      $region23: #{_lambda_.5} parent=11 // pred_region
        _
      $region24: #{_lambda_.5} parent=11 // pred_fallthru
        _
      // Predicated region
      $region25: #{_lambda_.5} parent=11 // pred_check
        %p220 = pneg %p123
      $region26: #{_lambda_.5} parent=11 // pred_check_branch
        %222 = sbr.rel (%p220) target = $region28
      $region27: #{_lambda_.5} parent=11 // pred_region
        _
      $region28: #{_lambda_.5} parent=11 // pred_fallthru
        _
      // Predicated region
      $region29: #{_lambda_.5} parent=11 // pred_check
        %p223 = pneg %p144
      $region30: #{_lambda_.5} parent=11 // pred_check_branch
        %225 = sbr.rel (%p223) target = $region32
      $region31: #{_lambda_.5} parent=11 // pred_region
        _
      $region32: #{_lambda_.5} parent=11 // pred_fallthru
        _
    $region12: #{_lambda_.5} parent=5 // pred_fallthru
      _
    %p226 = scmp.lt.s32.totalorder %s13, 2
    // Predicated region
    $region33: #{_lambda_.5} parent=5 // pred_check
      %p227 = pneg %p226
    $region34: #{_lambda_.5} parent=5 // pred_check_branch
      %229 = sbr.rel (%p227) target = $region36
    $region35: #{_lambda_.5} parent=5 // pred_region
      // Predicated region
      $region37: #{_lambda_.5} parent=35 // pred_check
        %p230 = pneg %p33
      $region38: #{_lambda_.5} parent=35 // pred_check_branch
        %232 = sbr.rel (%p230) target = $region40
      $region39: #{_lambda_.5} parent=35 // pred_region
        %p233 = scmp.lt.s32.totalorder %s13, 1
        %s234 = scalar_select %p233, %s13, 1
        %s235 = smul.addr %s234, 5
        %s236 = smul.addr %s235, 4
        %s237 = scalar_lea.vmem %s0, %s236
      $region40: #{_lambda_.5} parent=35 // pred_fallthru
        _
      // Predicated region
      $region41: #{_lambda_.5} parent=35 // pred_check
        %p238 = pneg %p164
      $region42: #{_lambda_.5} parent=35 // pred_check_branch
        %240 = sbr.rel (%p238) target = $region44
      $region43: #{_lambda_.5} parent=35 // pred_region
        %p241 = scmp.lt.s32.totalorder %s13, 1
        %s242 = scalar_select %p241, %s13, 1
        %s243 = smul.addr %s242, 4
        %s244 = smul.addr %s243, 4
        %s245 = scalar_lea.vmem %s6, %s244
      $region44: #{_lambda_.5} parent=35 // pred_fallthru
        _
    $region36: #{_lambda_.5} parent=5 // pred_fallthru
      _
    %p246 = scmp.le.s32.totalorder 1, %s13
    %p247 = scmp.lt.s32.totalorder %s13, 3
    %p248 = pnand %p246, %p247
    %p249 = pneg %p248
    // Predicated region
    $region45: #{_lambda_.5} parent=5 // pred_check
      _
    $region46: #{_lambda_.5} parent=5 // pred_check_branch
      %251 = sbr.rel (%p248) target = $region48
    $region47: #{_lambda_.5} parent=5 // pred_region
      %s252 = ssub.s32 %s13, 1
      %p253 = scmp.lt.s32.totalorder %s18, 1
      %s254 = scalar_select %p253, %s18, 1
      %s255 = smul.addr %s254, 5
      %s256 = smul.addr %s255, 4
      %s257 = scalar_lea.vmem %s0, %s256
      %p258 = pneg %p39
      %p259 = pneg %p36
      %p260 = pneg %p60
      %p261 = pneg %p57
      %p262 = pneg %p81
      %p263 = pneg %p78
      %p264 = pneg %p102
      %p265 = pneg %p99
      %p266 = pneg %p123
      %p267 = pneg %p120
      %p268 = pneg %p144
      %p269 = pneg %p141
      %p270 = scmp.lt.s32.totalorder %s18, 1
      %s271 = scalar_select %p270, %s18, 1
      %s272 = smul.addr %s271, 4
      %s273 = smul.addr %s272, 4
      %s274 = scalar_lea.vmem %s6, %s273
      %p275 = pneg %p170
      %p276 = pneg %p167
      %p277 = pneg %p196
      %p278 = pneg %p193
      %p279 = scmp.lt.s32.totalorder %s18, 1
      %s280 = scalar_select %p279, %s18, 1
      %s281 = smul.addr %s280, 4
      %s282 = smul.addr %s281, 4
      %s283 = scalar_lea.vmem %s7, %s282
      %p284 = scmp.lt.s32.totalorder %s18, 1
      %s285 = scalar_select %p284, %s18, 1
      %s286 = smul.addr %s285, 5
      %s287 = smul.addr %s286, 4
      %s288 = scalar_lea.vmem %s0, %s287
      %p289 = scmp.lt.s32.totalorder %s18, 1
      %s290 = scalar_select %p289, %s18, 1
      %s291 = smul.addr %s290, 4
      %s292 = smul.addr %s291, 4
      %s293 = scalar_lea.vmem %s6, %s292
      %p294 = scmp.lt.s32.totalorder %s18, 1
      %s295 = scalar_select %p294, %s18, 1
      %s296 = smul.addr %s295, 4
      %s297 = smul.addr %s296, 4
      %s298 = scalar_lea.vmem %s7, %s297
      %v299 = vld [vmem:[%s288] sm:$0xf]
      %v300 = vld [vmem:[%s288 + $0x4] sm:$0xf]
      %v301 = vld [vmem:[%s288 + $0x8] sm:$0xf]
      %v302 = vld [vmem:[%s288 + $0xc] sm:$0xf]
      %v303 = vld [vmem:[%s1] sm:$0xf]
      %v304 = vld [vmem:[%s1 + $0x4] sm:$0xf]
      %v305 = vld [vmem:[%s1 + $0x8] sm:$0xf]
      %v306 = vld [vmem:[%s1 + $0xc] sm:$0xf]
      %v307 = vld [vmem:[%s1 + $0x10] sm:$0xf]
      %v308 = vld [vmem:[%s1 + $0x14] sm:$0xf]
      %v309 = vld [vmem:[%s1 + $0x18] sm:$0xf]
      %v310 = vld [vmem:[%s1 + $0x1c] sm:$0xf]
      %v311 = vld [vmem:[%s1 + $0x20] sm:$0xf]
      %v312 = vld [vmem:[%s1 + $0x24] sm:$0xf]
      %v313 = vld [vmem:[%s1 + $0x28] sm:$0xf]
      %v314 = vld [vmem:[%s1 + $0x2c] sm:$0xf]
      %v315 = vld [vmem:[%s1 + $0x30] sm:$0xf]
      %v316 = vld [vmem:[%s1 + $0x34] sm:$0xf]
      %v317 = vld [vmem:[%s1 + $0x38] sm:$0xf]
      %v318 = vld [vmem:[%s1 + $0x3c] sm:$0xf]
      %v319 = vld [vmem:[%s288] sm:$0xe]
      %v320 = vld [vmem:[%s288 + $0x10] sm:$0x1]
      %s321 = scalar_lea.vmem %s1, 64
      %v322 = vld [vmem:[%s321] sm:$0xf]
      %v323 = vld [vmem:[%s321 + $0x4] sm:$0xf]
      %v324 = vld [vmem:[%s321 + $0x8] sm:$0xf]
      %v325 = vld [vmem:[%s321 + $0xc] sm:$0xf]
      %v326 = vld [vmem:[%s321 + $0x10] sm:$0xf]
      %v327 = vld [vmem:[%s321 + $0x14] sm:$0xf]
      %v328 = vld [vmem:[%s321 + $0x18] sm:$0xf]
      %v329 = vld [vmem:[%s321 + $0x1c] sm:$0xf]
      %v330 = vld [vmem:[%s321 + $0x20] sm:$0xf]
      %v331 = vld [vmem:[%s321 + $0x24] sm:$0xf]
      %v332 = vld [vmem:[%s321 + $0x28] sm:$0xf]
      %v333 = vld [vmem:[%s321 + $0x2c] sm:$0xf]
      %v334 = vld [vmem:[%s321 + $0x30] sm:$0xf]
      %v335 = vld [vmem:[%s321 + $0x34] sm:$0xf]
      %v336 = vld [vmem:[%s321 + $0x38] sm:$0xf]
      %v337 = vld [vmem:[%s321 + $0x3c] sm:$0xf]
      %v343 = vunpack.c.l.b16 %v319
      %v344 = vunpack.c.l.b16 %v300
      %v345 = vunpack.c.l.b16 %v301
      %v346 = vunpack.c.l.b16 %v302
      %v347 = vunpack.c.l.b16 %v320
      %v348 = vpack.c.b16 %v344, %v343
      %v349 = vpack.c.b16 %v346, %v345
      %v350 = vpack.c.b16 %v347, %v347
      %vm351 = vcmask 1046528
      %v352 = vrot.slane %v348, 1
      %v353 = vrot.slane %v349, 1
      %v354 = vsel %vm351, %v352, %v353
      %v355 = vrot.slane %v350, 1
      %v356 = vsel %vm351, %v353, %v355
      %v375 = vunpack.c.l.b16 %v322
      %v376 = vunpack.c.l.b16 %v323
      %v377 = vunpack.c.l.b16 %v324
      %v378 = vunpack.c.l.b16 %v325
      %v379 = vunpack.c.l.b16 %v326
      %v380 = vunpack.c.l.b16 %v327
      %v381 = vunpack.c.l.b16 %v328
      %v382 = vunpack.c.l.b16 %v329
      %v383 = vunpack.c.l.b16 %v330
      %v384 = vunpack.c.l.b16 %v331
      %v385 = vunpack.c.l.b16 %v332
      %v386 = vunpack.c.l.b16 %v333
      %v387 = vunpack.c.l.b16 %v334
      %v388 = vunpack.c.l.b16 %v335
      %v389 = vunpack.c.l.b16 %v336
      %v390 = vunpack.c.l.b16 %v337
      %v391 = vpack.c.b16 %v376, %v375
      %v392 = vpack.c.b16 %v378, %v377
      %v393 = vpack.c.b16 %v380, %v379
      %v394 = vpack.c.b16 %v382, %v381
      %v395 = vpack.c.b16 %v384, %v383
      %v396 = vpack.c.b16 %v386, %v385
      %v397 = vpack.c.b16 %v388, %v387
      %v398 = vpack.c.b16 %v390, %v389
      %407 = vmatpush.bf16.msra.mxu0 %v398
      %408 = vmatpush.bf16.msra.mxu0 %v397
      %409 = vmatpush.bf16.msra.mxu0 %v396
      %410 = vmatpush.bf16.msra.mxu0 %v395
      %411 = vmatpush.bf16.msra.mxu0 %v394
      %412 = vmatpush.bf16.msra.mxu0 %v393
      %413 = vmatpush.bf16.msra.mxu0 %v392
      %414 = vmatpush.bf16.msra.mxu0 %v391
      %415 = vmatmul.bf16.gmra.mxu0 %v354
      %v416 = vpop.f32.mrf.mxu0
      %v417 = vadd.f32 0.0, %v416
      %v418 = vpop.f32.mrf.mxu0
      %v419 = vadd.f32 0.0, %v418
      %420 = vmatmul.bf16.gmra.mxu0 %v356
      %v421 = vpop.f32.mrf.mxu0
      %v422 = vadd.f32 0.0, %v421
      %v423 = vpop.f32.mrf.mxu0
      %v424 = vadd.f32 0.0, %v423
      %425 = vdwg.mxu0
      %v427 = vunpack.c.l.b16 %v299
      %v428 = vpack.c.b16 %v344, %v427
      %v447 = vunpack.c.l.b16 %v303
      %v448 = vunpack.c.l.b16 %v304
      %v449 = vunpack.c.l.b16 %v305
      %v450 = vunpack.c.l.b16 %v306
      %v451 = vunpack.c.l.b16 %v307
      %v452 = vunpack.c.l.b16 %v308
      %v453 = vunpack.c.l.b16 %v309
      %v454 = vunpack.c.l.b16 %v310
      %v455 = vunpack.c.l.b16 %v311
      %v456 = vunpack.c.l.b16 %v312
      %v457 = vunpack.c.l.b16 %v313
      %v458 = vunpack.c.l.b16 %v314
      %v459 = vunpack.c.l.b16 %v315
      %v460 = vunpack.c.l.b16 %v316
      %v461 = vunpack.c.l.b16 %v317
      %v462 = vunpack.c.l.b16 %v318
      %v463 = vpack.c.b16 %v448, %v447
      %v464 = vpack.c.b16 %v450, %v449
      %v465 = vpack.c.b16 %v452, %v451
      %v466 = vpack.c.b16 %v454, %v453
      %v467 = vpack.c.b16 %v456, %v455
      %v468 = vpack.c.b16 %v458, %v457
      %v469 = vpack.c.b16 %v460, %v459
      %v470 = vpack.c.b16 %v462, %v461
      %479 = vmatpush.bf16.msra.mxu0 %v470
      %480 = vmatpush.bf16.msra.mxu0 %v469
      %481 = vmatpush.bf16.msra.mxu0 %v468
      %482 = vmatpush.bf16.msra.mxu0 %v467
      %483 = vmatpush.bf16.msra.mxu0 %v466
      %484 = vmatpush.bf16.msra.mxu0 %v465
      %485 = vmatpush.bf16.msra.mxu0 %v464
      %486 = vmatpush.bf16.msra.mxu0 %v463
      %487 = vmatmul.bf16.gmra.mxu0 %v428
      %v488 = vpop.f32.mrf.mxu0
      %v489 = vadd.f32 %v417, %v488
      %v490 = vpop.f32.mrf.mxu0
      %v491 = vadd.f32 %v419, %v490
      %492 = vmatmul.bf16.gmra.mxu0 %v349
      %v493 = vpop.f32.mrf.mxu0
      %v494 = vadd.f32 %v422, %v493
      %v495 = vpop.f32.mrf.mxu0
      %v496 = vadd.f32 %v424, %v495
      %497 = vdwg.mxu0
      %v498 = vld [vmem:[%s288] sm:$0xc]
      %v499 = vld [vmem:[%s288 + $0x10] sm:$0x3]
      %s500 = scalar_lea.vmem %s1, 128
      %v501 = vld [vmem:[%s500] sm:$0xf]
      %v502 = vld [vmem:[%s500 + $0x4] sm:$0xf]
      %v503 = vld [vmem:[%s500 + $0x8] sm:$0xf]
      %v504 = vld [vmem:[%s500 + $0xc] sm:$0xf]
      %v505 = vld [vmem:[%s500 + $0x10] sm:$0xf]
      %v506 = vld [vmem:[%s500 + $0x14] sm:$0xf]
      %v507 = vld [vmem:[%s500 + $0x18] sm:$0xf]
      %v508 = vld [vmem:[%s500 + $0x1c] sm:$0xf]
      %v509 = vld [vmem:[%s500 + $0x20] sm:$0xf]
      %v510 = vld [vmem:[%s500 + $0x24] sm:$0xf]
      %v511 = vld [vmem:[%s500 + $0x28] sm:$0xf]
      %v512 = vld [vmem:[%s500 + $0x2c] sm:$0xf]
      %v513 = vld [vmem:[%s500 + $0x30] sm:$0xf]
      %v514 = vld [vmem:[%s500 + $0x34] sm:$0xf]
      %v515 = vld [vmem:[%s500 + $0x38] sm:$0xf]
      %v516 = vld [vmem:[%s500 + $0x3c] sm:$0xf]
      %v519 = vunpack.c.l.b16 %v498
      %v520 = vunpack.c.l.b16 %v499
      %v521 = vpack.c.b16 %v344, %v519
      %v522 = vpack.c.b16 %v520, %v520
      %vm523 = vcmask 1045504
      %v524 = vrot.slane %v521, 2
      %v525 = vrot.slane %v349, 2
      %v526 = vsel %vm523, %v524, %v525
      %v527 = vrot.slane %v522, 2
      %v528 = vsel %vm523, %v525, %v527
      %v547 = vunpack.c.l.b16 %v501
      %v548 = vunpack.c.l.b16 %v502
      %v549 = vunpack.c.l.b16 %v503
      %v550 = vunpack.c.l.b16 %v504
      %v551 = vunpack.c.l.b16 %v505
      %v552 = vunpack.c.l.b16 %v506
      %v553 = vunpack.c.l.b16 %v507
      %v554 = vunpack.c.l.b16 %v508
      %v555 = vunpack.c.l.b16 %v509
      %v556 = vunpack.c.l.b16 %v510
      %v557 = vunpack.c.l.b16 %v511
      %v558 = vunpack.c.l.b16 %v512
      %v559 = vunpack.c.l.b16 %v513
      %v560 = vunpack.c.l.b16 %v514
      %v561 = vunpack.c.l.b16 %v515
      %v562 = vunpack.c.l.b16 %v516
      %v563 = vpack.c.b16 %v548, %v547
      %v564 = vpack.c.b16 %v550, %v549
      %v565 = vpack.c.b16 %v552, %v551
      %v566 = vpack.c.b16 %v554, %v553
      %v567 = vpack.c.b16 %v556, %v555
      %v568 = vpack.c.b16 %v558, %v557
      %v569 = vpack.c.b16 %v560, %v559
      %v570 = vpack.c.b16 %v562, %v561
      %579 = vmatpush.bf16.msra.mxu0 %v570
      %580 = vmatpush.bf16.msra.mxu0 %v569
      %581 = vmatpush.bf16.msra.mxu0 %v568
      %582 = vmatpush.bf16.msra.mxu0 %v567
      %583 = vmatpush.bf16.msra.mxu0 %v566
      %584 = vmatpush.bf16.msra.mxu0 %v565
      %585 = vmatpush.bf16.msra.mxu0 %v564
      %586 = vmatpush.bf16.msra.mxu0 %v563
      %587 = vmatmul.bf16.gmra.mxu0 %v526
      %v588 = vpop.f32.mrf.mxu0
      %v589 = vadd.f32 0.0, %v588
      %v590 = vpop.f32.mrf.mxu0
      %v591 = vadd.f32 0.0, %v590
      %592 = vmatmul.bf16.gmra.mxu0 %v528
      %v593 = vpop.f32.mrf.mxu0
      %v594 = vadd.f32 0.0, %v593
      %v595 = vpop.f32.mrf.mxu0
      %v596 = vadd.f32 0.0, %v595
      %597 = vdwg.mxu0
      %v598 = vadd.f32 %v489, %v589
      %v599 = vadd.f32 %v491, %v591
      %v600 = vadd.f32 %v494, %v594
      %v601 = vadd.f32 %v496, %v596
      %v602 = vadd.f32 %v598, %v599
      %v603 = vadd.f32 %v602, %v600
      %v604 = vadd.f32 %v603, %v601
      %v605 = vrot.slane %v604, 4
      %v606 = vadd.f32 %v604, %v605
      %v607 = vrot.slane %v606, 2
      %v608 = vadd.f32 %v606, %v607
      %v609 = vrot.slane %v608, 1
      %v610 = vadd.f32 %v608, %v609
      %v611 = vmul.f32 %v610, 0.03125
      %v612 = vld [vmem:[%s2] sm:$0xff]
      %v613 = vld [vmem:[%s2 + $0x8] sm:$0xff]
      %v614 = vld [vmem:[%s2 + $0x10] sm:$0xff]
      %v615 = vld [vmem:[%s2 + $0x18] sm:$0xff]
      %v616 = vld [vmem:[%s2 + $0x20] sm:$0xff]
      %v617 = vld [vmem:[%s2 + $0x28] sm:$0xff]
      %v618 = vld [vmem:[%s2 + $0x30] sm:$0xff]
      %v619 = vld [vmem:[%s2 + $0x38] sm:$0xff]
      %v620 = vld [vmem:[%s2 + $0x40] sm:$0xff]
      %v621 = vld [vmem:[%s2 + $0x48] sm:$0xff]
      %v622 = vld [vmem:[%s2 + $0x50] sm:$0xff]
      %v623 = vld [vmem:[%s2 + $0x58] sm:$0xff]
      %v624 = vld [vmem:[%s2 + $0x60] sm:$0xff]
      %v625 = vld [vmem:[%s2 + $0x68] sm:$0xff]
      %v626 = vld [vmem:[%s2 + $0x70] sm:$0xff]
      %v627 = vld [vmem:[%s2 + $0x78] sm:$0xff]
      %v628 = vld [vmem:[%s3] sm:$0x1]
      %629 = vmatpush.msra.mxu0 %v627
      %630 = vmatpush.msra.mxu0 %v626
      %631 = vmatpush.msra.mxu0 %v625
      %632 = vmatpush.msra.mxu0 %v624
      %633 = vmatpush.msra.mxu0 %v623
      %634 = vmatpush.msra.mxu0 %v622
      %635 = vmatpush.msra.mxu0 %v621
      %636 = vmatpush.msra.mxu0 %v620
      %637 = vmatpush.msra.mxu0 %v619
      %638 = vmatpush.msra.mxu0 %v618
      %639 = vmatpush.msra.mxu0 %v617
      %640 = vmatpush.msra.mxu0 %v616
      %641 = vmatpush.msra.mxu0 %v615
      %642 = vmatpush.msra.mxu0 %v614
      %643 = vmatpush.msra.mxu0 %v613
      %644 = vmatpush.msra.mxu0 %v612
      %645 = vmatmul.f32.gmra.mxu0 %v611
      %v646 = vpop.f32.mrf.mxu0
      %v647 = vadd.f32 %v628, %v646
      %648 = vdwg.mxu0
      %v649 = vmax.f32 %v647, 0.0
      %v650 = vld [vmem:[%s4] sm:$0xf]
      %v651 = vld [vmem:[%s5] sm:$0x1]
      %vm652 = vcmask 31744
      %v654 = vsel %vm652, %v649, 0
      %vm656 = vcmask 1043456
      %v658 = vsel %vm656, %v650, 0
      %660 = vmatpush.msra.mxu0 0.0
      %661 = vmatpush.msra.mxu0 0.0
      %662 = vmatpush.msra.mxu0 0.0
      %663 = vmatpush.msra.mxu0 0.0
      %664 = vmatpush.msra.mxu0 0.0
      %665 = vmatpush.msra.mxu0 0.0
      %666 = vmatpush.msra.mxu0 0.0
      %667 = vmatpush.msra.mxu0 0.0
      %668 = vmatpush.msra.mxu0 0.0
      %669 = vmatpush.msra.mxu0 0.0
      %670 = vmatpush.msra.mxu0 0.0
      %671 = vmatpush.msra.mxu0 0.0
      %672 = vmatpush.msra.mxu0 0.0
      %673 = vmatpush.msra.mxu0 0.0
      %674 = vmatpush.msra.mxu0 0.0
      %675 = vmatpush.msra.mxu0 %v658
      %676 = vmatmul.f32.gmra.mxu0 %v654
      %v677 = vpop.f32.mrf.mxu0
      %v678 = vadd.f32 %v651, %v677
      %679 = vdwg.mxu0
      %v680 = vsub.f32 0.0, %v678
      %v681 = vmul.f32 %v680, 1.442695
      %v682 = vpow.pop %v681
      %v683 = vadd.f32 %v682, 1.0
      %v684 = vrcp.pop %v683
      %v685 = vmul.f32 %v683, %v684
      %v686 = vsub.f32 1.0, %v685
      %v687 = vmul.f32 %v684, %v686
      %v688 = vadd.f32 %v684, %v687
      %vm689 = vweird.f32 %v683
      %vm690 = vweird.f32 %v684
      %vm691 = vmor %vm689, %vm690
      %v692 = vsel %vm691, %v684, %v688
      %v693 = vand.u32 2147483647, %v683
      %vm694 = vcmp.eq.f32.partialorder %v693, 8.507059e+37
      %v695 = vand.u32 %v683, 2147483648
      %v696 = vor.u32 1.1754944e-38, %v695
      %v697 = vsel %vm694, %v696, %v692
      %v698 = vmul.f32 1.0, %v697
      %v699 = vperm.slane %v698, 0
      %v700 = vmul.f32 %v598, %v699
      %v701 = vmul.f32 %v599, %v699
      %v702 = vmul.f32 %v600, %v699
      %v703 = vmul.f32 %v601, %v699
      %v704 = vld [vmem:[%s293] sm:$0xf]
      %v705 = vld [vmem:[%s293 + $0x4] sm:$0xf]
      %v706 = vld [vmem:[%s293 + $0x8] sm:$0xf]
      %v707 = vld [vmem:[%s293 + $0xc] sm:$0xf]
      %v708 = vunpack.c.l.bf16 %v704
      %v709 = vunpack.c.l.bf16 %v705
      %v710 = vunpack.c.l.bf16 %v706
      %v711 = vunpack.c.l.bf16 %v707
      %v712 = vadd.f32 %v700, %v708
      %v713 = vadd.f32 %v701, %v709
      %v714 = vadd.f32 %v702, %v710
      %v715 = vadd.f32 %v703, %v711
      %v716 = vpack.c.bf16 %v712, %v712
      %v717 = vpack.c.bf16 %v713, %v713
      %v718 = vpack.c.bf16 %v714, %v714
      %v719 = vpack.c.bf16 %v715, %v715
      %720 = vst [vmem:[%s298] sm:$0xf] %v716
      %721 = vst [vmem:[%s298 + $0x4] sm:$0xf] %v717
      %722 = vst [vmem:[%s298 + $0x8] sm:$0xf] %v718
      %723 = vst [vmem:[%s298 + $0xc] sm:$0xf] %v719
      %p724 = scmp.lt.s32.totalorder %s18, 1
      %s725 = scalar_select %p724, %s18, 1
      %s726 = smul.addr %s725, 4
      %s727 = smul.addr %s726, 4
      %s728 = scalar_lea.vmem %s7, %s727
      // Predicated region
      $region49: #{_lambda_.5} parent=47 // pred_check
        %p729 = pneg %p193
      $region50: #{_lambda_.5} parent=47 // pred_check_branch
        %731 = sbr.rel (%p729) target = $region52
      $region51: #{_lambda_.5} parent=47 // pred_region
        _
      $region52: #{_lambda_.5} parent=47 // pred_fallthru
        _
    $region48: #{_lambda_.5} parent=5 // pred_fallthru
      _
    %p732 = scmp.le.s32.totalorder 2, %s13
    // Predicated region
    $region53: #{_lambda_.5} parent=5 // pred_check
      %p733 = pneg %p732
    $region54: #{_lambda_.5} parent=5 // pred_check_branch
      %735 = sbr.rel (%p733) target = $region56
    $region55: #{_lambda_.5} parent=5 // pred_region
      %s736 = ssub.s32 %s13, 2
      // Predicated region
      $region57: #{_lambda_.5} parent=55 // pred_check
        %p737 = pneg %p199
      $region58: #{_lambda_.5} parent=55 // pred_check_branch
        %739 = sbr.rel (%p737) target = $region60
      $region59: #{_lambda_.5} parent=55 // pred_region
        %p740 = scmp.lt.s32.totalorder %s19, 1
        %s741 = scalar_select %p740, %s19, 1
        %s742 = smul.addr %s741, 4
        %s743 = smul.addr %s742, 4
        %s744 = scalar_lea.vmem %s7, %s743
      $region60: #{_lambda_.5} parent=55 // pred_fallthru
        _
    $region56: #{_lambda_.5} parent=5 // pred_fallthru
      _
  $region6: #{_lambda_.5} parent=0 // loop_footer
    %s17 = sadd.s32 1, %s13
  $region7: #{_lambda_.5} parent=0 // loop_footer_branch
    %12 = sbr.rel target = $region3
  $region8: #{_lambda_.5} parent=0 // loop_exit
    _

</llo_original>
